<compile_context>
chip_gen: v5e
topology: v5e:2x2
jax: 0.10.0
libtpu: 0.0.40
codegen_flags: <defaults>
</compile_context>

<pallas_src>
import jax
import jax.numpy as jnp
from jax.experimental import pallas as pl
from jax.experimental.pallas import tpu as pltpu

# ---- hyperparameters (ModelArgs: d_model=32, expand=2, d_state=16, d_conv=4) ----
D_MODEL = 32
EXPAND = 2
D_INNER = EXPAND * D_MODEL          # 64
D_STATE = 16                        # n
DT_RANK = 2                         # ceil(d_model / 16)
D_CONV = 4
BATCH = 2
SEQLEN = 8


def mamba_block_kernel(
    x_ref,        # (bb, L, D_MODEL)
    w_in_ref,     # (D_MODEL, 2*D_INNER)   fused in_proj  [x | res]
    w_xp_ref,     # (D_INNER, 128)         fused [w_delta@w_dt | B | C | 0-pad]
    slab_ref,     # (24, D_INNER)          [conv_w(4) | conv_b | b_dt | D | pad | -exp(A_log).T(16)]
    w_out_ref,    # (D_INNER, D_MODEL)
    out_ref,      # (bb, L, D_MODEL)
):
    bb, L, _ = x_ref.shape
    R = bb * L
    DI = D_INNER

    # Leading-dim merge is a layout no-op (L = 8 is sublane aligned).
    x = x_ref[...].reshape(R, D_MODEL)

    # ---------------- parameter slab (sublane slices) ----------------
    slab = slab_ref[...]
    conv_w = slab[0:D_CONV, :]                   # (4, 64)
    conv_b = slab[D_CONV:D_CONV + 1, :]          # (1, 64)
    b_dt = slab[D_CONV + 1:D_CONV + 2, :]        # (1, 64)
    Dv = slab[D_CONV + 2:D_CONV + 3, :]          # (1, 64)
    A_neg = slab[8:8 + D_STATE, :]               # (16, 64)  == -exp(A_log).T

    # ---------------- in_proj (fused x|res): one MXU pass ----------------
    xr = jnp.dot(x, w_in_ref[...], preferred_element_type=jnp.float32)   # (R, 128)
    xs = xr[:, :DI]                                                       # (R, 64)
    res = xr[:, DI:]                                                      # (R, 64)

    # ---------------- causal depthwise conv1d (roll + mask, no MXU) ----------------
    # out[t, c] = bias[c] + sum_k w[k, c] * xs[t + k - (D_CONV-1), c]
    # pos = position within each length-L sequence; masking pos < s applies both
    # the causal zero-pad and the fused-batch boundary.
    pos = jax.lax.broadcasted_iota(jnp.int32, (R, DI), 0) % L
    conv = xs * conv_w[D_CONV - 1:D_CONV, :] + conv_b                     # s = 0 tap
    for k in range(D_CONV - 1):
        s = D_CONV - 1 - k                                                # 3, 2, 1
        shifted = pltpu.roll(xs, shift=s, axis=0)                         # xs[t - s]
        shifted = jnp.where(pos >= s, shifted, 0.0)
        conv = conv + conv_w[k:k + 1, :] * shifted
    u = conv * jax.nn.sigmoid(conv)                                       # SiLU, (R, 64)

    # ---------------- fused x_proj (dt_proj already folded in) ----------------
    xdbl = jnp.dot(u, w_xp_ref[...], preferred_element_type=jnp.float32)  # (R, 128)
    delta = jax.nn.softplus(xdbl[:, :DI] + b_dt)                          # (R, 64)
    Bm = xdbl[:, DI:DI + D_STATE]                                         # (R, 16)
    Cm = xdbl[:, DI + D_STATE:DI + 2 * D_STATE]                           # (R, 16)

    # ---------------- lane-pack: batch next to d_inner on the lane axis ----------------
    def pack_rows(a):   # (R, w) -> (L, bb*w)
        return jnp.concatenate([a[bi * L:(bi + 1) * L, :] for bi in range(bb)], axis=-1)

    delta_pk = pack_rows(delta)                                           # (L, bb*64)
    u_pk = pack_rows(u)
    res_pk = pack_rows(res)
    du = delta * u
    A2 = jnp.concatenate([A_neg] * bb, axis=-1)                           # (16, bb*64)
    D_pk = jnp.concatenate([Dv] * bb, axis=-1)                            # (1, bb*64)
    dBu = jnp.concatenate(
        [du[bi * L:(bi + 1) * L, None, :] * Bm[bi * L:(bi + 1) * L, :, None]
         for bi in range(bb)], axis=-1)                                   # (L, 16, bb*64)
    Cst = jnp.concatenate(
        [jnp.broadcast_to(Cm[bi * L:(bi + 1) * L, :, None], (L, D_STATE, DI))
         for bi in range(bb)], axis=-1)                                   # (L, 16, bb*64)

    # ---------------- sequential selective scan (sequences in lockstep on lanes) ----------------
    # deltaA is built per step (EUP exp, not on the h critical chain) so the
    # unrolled loop keeps live vregs low; y_t is reduced per step (XLU), no H stack.
    # TODO(synk): for L beyond a few hundred, replace this static unroll with a
    # chunked lax.fori_loop carrying h (building dBu/Cst per chunk) so VMEM stays
    # under the v7x 64 MiB ceiling.
    h = dBu[0]                                                            # (16, bb*64)
    ys = [jnp.sum(h * Cst[0], axis=0, keepdims=True)]                     # (1, bb*64)
    for t in range(1, L):
        dA = jnp.exp(delta_pk[t:t + 1, :] * A2)                           # (16, bb*64)
        h = dA * h + dBu[t]
        ys.append(jnp.sum(h * Cst[t], axis=0, keepdims=True))
    Y = jnp.concatenate(ys, axis=0)                                       # (L, bb*64)

    # ---------------- skip connection + SiLU(res) gate + out_proj ----------------
    Y = Y + u_pk * D_pk
    Y = Y * (res_pk * jax.nn.sigmoid(res_pk))
    # unpack batch off the lane axis back to rows for the output matmul
    y = jnp.concatenate([Y[:, bi * DI:(bi + 1) * DI] for bi in range(bb)], axis=0)  # (R, 64)
    out = jnp.dot(y, w_out_ref[...], preferred_element_type=jnp.float32)  # (R, 32)
    # Single whole-block store (leading-dim split is a layout no-op).  If batch /
    # seqlen grow, present a (b, L*D_MODEL) lane-dense output slab instead.
    out_ref[...] = out.reshape(bb, L, D_MODEL)


def mamba_block(x, params):
    (w_in_x, w_in_res, conv_w, conv_b, w_delta, w_B, w_C,
     w_dt, b_dt, A_log, D, w_out) = params
    b, l, _ = x.shape

    # One-time wrapper-side packing:
    #  * in_proj fused -> (32, 128), single MXU pass
    #  * dt_proj folded into x_proj: [w_delta@w_dt | B | C], zero-padded to 128 lanes
    #  * tiny per-channel params + (-exp(A_log)).T packed into one (24, 64) slab
    w_in = jnp.concatenate([w_in_x, w_in_res], axis=1)                    # (32, 128)
    w_eff = w_delta @ w_dt                                                # (64, 64)
    pad_cols = 128 - (D_INNER + 2 * D_STATE)
    w_xp = jnp.concatenate(
        [w_eff, w_B, w_C, jnp.zeros((D_INNER, pad_cols), jnp.float32)], axis=1)  # (64, 128)
    slab = jnp.concatenate([
        conv_w,                                   # rows 0-3
        conv_b,                                   # row 4
        b_dt,                                     # row 5
        D,                                        # row 6
        jnp.zeros((1, D_INNER), jnp.float32),     # row 7 (pad to sublane tile)
        (-jnp.exp(A_log)).T,                      # rows 8-23
    ], axis=0)                                    # (24, 64)

    def full_spec(a):
        nd = a.ndim
        return pl.BlockSpec(a.shape, lambda i, nd=nd: (0,) * nd)

    # Whole batch fused into one grid step on every generation: the per-sequence
    # scans advance in lockstep on the lane axis, which beats serial grid steps
    # on 1-TC chips and avoids relying on an unverified 2-TC split on v7x.
    return pl.pallas_call(
        mamba_block_kernel,
        out_shape=jax.ShapeDtypeStruct((b, l, D_MODEL), jnp.float32),
        grid=(1,),
        in_specs=[
            pl.BlockSpec((b, l, D_MODEL), lambda i: (0, 0, 0)),
            full_spec(w_in), full_spec(w_xp), full_spec(slab), full_spec(w_out),
        ],
        out_specs=pl.BlockSpec((b, l, D_MODEL), lambda i: (0, 0, 0)),
        compiler_params=pltpu.CompilerParams(dimension_semantics=("arbitrary",)),
    )(x, w_in, w_xp, slab, w_out)


def reference(x, params):
    """Pure-JAX reference of MambaBlock.forward (same math as the PyTorch code)."""
    (w_in_x, w_in_res, conv_w, conv_b, w_delta, w_B, w_C,
     w_dt, b_dt, A_log, D, w_out) = params
    b, l, d = x.shape
    xs = x @ w_in_x
    res = x @ w_in_res
    # causal depthwise conv (pad left by D_CONV-1, keep first l)
    pad = jnp.pad(xs, ((0, 0), (D_CONV - 1, 0), (0, 0)))
    conv = jnp.broadcast_to(conv_b[0], xs.shape)
    for k in range(D_CONV):
        conv = conv + conv_w[k][None, None, :] * pad[:, k:k + l, :]
    u = jax.nn.silu(conv)
    delta = jax.nn.softplus((u @ w_delta) @ w_dt + b_dt[0])
    Bm = u @ w_B
    Cm = u @ w_C
    A = -jnp.exp(A_log)
    deltaA = jnp.exp(delta[..., None] * A[None, None])               # (b,l,d_in,n)
    dBu = delta[..., None] * Bm[:, :, None, :] * u[..., None]
    h = jnp.zeros((b, D_INNER, D_STATE), jnp.float32)
    ys = []
    for i in range(l):
        h = deltaA[:, i] * h + dBu[:, i]
        ys.append(jnp.sum(h * Cm[:, i, None, :], axis=-1))
    y = jnp.stack(ys, axis=1) + u * D[0]
    y = y * jax.nn.silu(res)
    return y @ w_out


def init_params(key):
    ks = jax.random.split(key, 10)
    n = lambda k, shape, scale: (jax.random.normal(k, shape, jnp.float32) * scale)
    w_in_x = n(ks[0], (D_MODEL, D_INNER), D_MODEL ** -0.5)
    w_in_res = n(ks[1], (D_MODEL, D_INNER), D_MODEL ** -0.5)
    conv_w = n(ks[2], (D_CONV, D_INNER), D_CONV ** -0.5)
    conv_b = n(ks[3], (1, D_INNER), 0.05)
    w_delta = n(ks[4], (D_INNER, DT_RANK), D_INNER ** -0.5)
    w_B = n(ks[5], (D_INNER, D_STATE), D_INNER ** -0.5)
    w_C = n(ks[6], (D_INNER, D_STATE), D_INNER ** -0.5)
    w_dt = n(ks[7], (DT_RANK, D_INNER), DT_RANK ** -0.5)
    b_dt = n(ks[8], (1, D_INNER), 0.05)
    A_log = jnp.log(jnp.broadcast_to(
        jnp.arange(1, D_STATE + 1, dtype=jnp.float32), (D_INNER, D_STATE)))
    D = jnp.ones((1, D_INNER), jnp.float32)
    w_out = n(ks[9], (D_INNER, D_MODEL), D_INNER ** -0.5)
    return (w_in_x, w_in_res, conv_w, conv_b, w_delta, w_B, w_C,
            w_dt, b_dt, A_log, D, w_out)


if __name__ == "__main__":
    key = jax.random.PRNGKey(0)
    kx, kp = jax.random.split(key)
    x = jax.random.normal(kx, (BATCH, SEQLEN, D_MODEL), jnp.float32)
    params = init_params(kp)

    out = mamba_block(x, params)
    out = jax.block_until_ready(out)

    ref = reference(x, params)
    assert out.shape == (BATCH, SEQLEN, D_MODEL)
    assert jnp.allclose(out, ref, atol=1e-2, rtol=1e-2), (
        f"max abs err {jnp.max(jnp.abs(out - ref))}")
    print("KERNEL_OK")
</pallas_src>

<mosaic_0001>
module attributes {stable_mosaic.version = 11 : i64} {
  func.func @mamba_block_kernel(%arg0: i32, %arg1: memref<2x8x32xf32, #tpu.memory_space<vmem>>, %arg2: memref<32x128xf32, #tpu.memory_space<vmem>>, %arg3: memref<64x128xf32, #tpu.memory_space<vmem>>, %arg4: memref<24x64xf32, #tpu.memory_space<vmem>>, %arg5: memref<64x32xf32, #tpu.memory_space<vmem>>, %arg6: memref<2x8x32xf32, #tpu.memory_space<vmem>>) attributes {dimension_semantics = [#tpu.dimension_semantics<arbitrary>], iteration_bounds = array<i64: 1>, scalar_prefetch = 0 : i64, scratch_operands = 0 : i64, tpu.core_type = #tpu.core_type<tc>, window_params = [{pipeline_mode = #tpu.pipeline_mode<synchronous>, transform_indices = @transform_0, window_bounds = array<i64: 2, 8, 32>}, {pipeline_mode = #tpu.pipeline_mode<synchronous>, transform_indices = @transform_1, window_bounds = array<i64: 32, 128>}, {pipeline_mode = #tpu.pipeline_mode<synchronous>, transform_indices = @transform_2, window_bounds = array<i64: 64, 128>}, {pipeline_mode = #tpu.pipeline_mode<synchronous>, transform_indices = @transform_3, window_bounds = array<i64: 24, 64>}, {pipeline_mode = #tpu.pipeline_mode<synchronous>, transform_indices = @transform_4, window_bounds = array<i64: 64, 32>}, {pipeline_mode = #tpu.pipeline_mode<synchronous>, transform_indices = @transform_5, window_bounds = array<i64: 2, 8, 32>}]} {
    %c0 = arith.constant 0 : index
    %c0_0 = arith.constant 0 : index
    %c0_1 = arith.constant 0 : index
    %0 = vector.load %arg1[%c0, %c0_0, %c0_1] : memref<2x8x32xf32, #tpu.memory_space<vmem>>, vector<2x8x32xf32>
    %1 = vector.shape_cast %0 : vector<2x8x32xf32> to vector<16x32xf32>
    %c0_2 = arith.constant 0 : index
    %c0_3 = arith.constant 0 : index
    %2 = vector.load %arg4[%c0_2, %c0_3] : memref<24x64xf32, #tpu.memory_space<vmem>>, vector<24x64xf32>
    %3 = vector.extract_strided_slice %2 {offsets = [0, 0], sizes = [4, 64], strides = [1, 1]} : vector<24x64xf32> to vector<4x64xf32>
    %4 = vector.extract_strided_slice %2 {offsets = [4, 0], sizes = [1, 64], strides = [1, 1]} : vector<24x64xf32> to vector<1x64xf32>
    %5 = vector.extract_strided_slice %2 {offsets = [5, 0], sizes = [1, 64], strides = [1, 1]} : vector<24x64xf32> to vector<1x64xf32>
    %6 = vector.extract_strided_slice %2 {offsets = [6, 0], sizes = [1, 64], strides = [1, 1]} : vector<24x64xf32> to vector<1x64xf32>
    %7 = vector.extract_strided_slice %2 {offsets = [8, 0], sizes = [16, 64], strides = [1, 1]} : vector<24x64xf32> to vector<16x64xf32>
    %c0_4 = arith.constant 0 : index
    %c0_5 = arith.constant 0 : index
    %8 = vector.load %arg2[%c0_4, %c0_5] : memref<32x128xf32, #tpu.memory_space<vmem>>, vector<32x128xf32>
    %cst = arith.constant dense<0.000000e+00> : vector<16x128xf32>
    %9 = tpu.matmul %1, %8, %cst {dimension_numbers = #tpu.dot_dimension_numbers<[1], [0], [0], [1], [0, 0, 1, 1], [], []>} : vector<16x32xf32>, vector<32x128xf32>, vector<16x128xf32> -> vector<16x128xf32>
    %10 = vector.extract_strided_slice %9 {offsets = [0, 0], sizes = [16, 64], strides = [1, 1]} : vector<16x128xf32> to vector<16x64xf32>
    %11 = vector.extract_strided_slice %9 {offsets = [0, 64], sizes = [16, 64], strides = [1, 1]} : vector<16x128xf32> to vector<16x64xf32>
    %12 = tpu.iota {dimensions = array<i32: 0>} : vector<16x64xi32>
    %c8_i32 = arith.constant 8 : i32
    %c0_i32 = arith.constant 0 : i32
    %13 = arith.cmpi eq, %c8_i32, %c0_i32 : i32
    %c1_i32 = arith.constant 1 : i32
    %14 = arith.select %13, %c1_i32, %c8_i32 : i32
    %15 = vector.broadcast %14 : i32 to vector<16x64xi32>
    %16 = arith.remsi %12, %15 : vector<16x64xi32>
    %c0_i32_6 = arith.constant 0 : i32
    %17 = vector.broadcast %c0_i32_6 : i32 to vector<16x64xi32>
    %18 = arith.cmpi ne, %16, %17 : vector<16x64xi32>
    %c0_i32_7 = arith.constant 0 : i32
    %19 = vector.broadcast %c0_i32_7 : i32 to vector<16x64xi32>
    %20 = arith.cmpi slt, %16, %19 : vector<16x64xi32>
    %c0_i32_8 = arith.constant 0 : i32
    %21 = arith.cmpi slt, %14, %c0_i32_8 : i32
    %22 = vector.broadcast %21 : i1 to vector<16x64xi1>
    %23 = vector.broadcast %22 : vector<16x64xi1> to vector<16x64xi1>
    %24 = arith.xori %20, %23 : vector<16x64xi1>
    %25 = arith.andi %24, %18 : vector<16x64xi1>
    %26 = vector.broadcast %14 : i32 to vector<16x64xi32>
    %27 = arith.addi %16, %26 : vector<16x64xi32>
    %28 = arith.select %25, %27, %16 : vector<16x64xi1>, vector<16x64xi32>
    %29 = vector.extract_strided_slice %3 {offsets = [3, 0], sizes = [1, 64], strides = [1, 1]} : vector<4x64xf32> to vector<1x64xf32>
    %30 = vector.broadcast %29 : vector<1x64xf32> to vector<16x64xf32>
    %31 = arith.mulf %10, %30 : vector<16x64xf32>
    %32 = vector.broadcast %4 : vector<1x64xf32> to vector<16x64xf32>
    %33 = arith.addf %31, %32 : vector<16x64xf32>
    %c3_i32 = arith.constant 3 : i32
    %34 = tpu.dynamic_rotate %10 by %c3_i32 dim 0 : vector<16x64xf32>, i32 -> vector<16x64xf32>
    %c3_i32_9 = arith.constant 3 : i32
    %35 = vector.broadcast %c3_i32_9 : i32 to vector<16x64xi32>
    %36 = arith.cmpi sge, %28, %35 : vector<16x64xi32>
    %cst_10 = arith.constant 0.000000e+00 : f32
    %37 = vector.broadcast %cst_10 : f32 to vector<16x64xf32>
    %38 = arith.select %36, %34, %37 : vector<16x64xi1>, vector<16x64xf32>
    %39 = vector.extract_strided_slice %3 {offsets = [0, 0], sizes = [1, 64], strides = [1, 1]} : vector<4x64xf32> to vector<1x64xf32>
    %40 = vector.broadcast %39 : vector<1x64xf32> to vector<16x64xf32>
    %41 = arith.mulf %40, %38 : vector<16x64xf32>
    %42 = arith.addf %33, %41 : vector<16x64xf32>
    %c2_i32 = arith.constant 2 : i32
    %43 = tpu.dynamic_rotate %10 by %c2_i32 dim 0 : vector<16x64xf32>, i32 -> vector<16x64xf32>
    %c2_i32_11 = arith.constant 2 : i32
    %44 = vector.broadcast %c2_i32_11 : i32 to vector<16x64xi32>
    %45 = arith.cmpi sge, %28, %44 : vector<16x64xi32>
    %cst_12 = arith.constant 0.000000e+00 : f32
    %46 = vector.broadcast %cst_12 : f32 to vector<16x64xf32>
    %47 = arith.select %45, %43, %46 : vector<16x64xi1>, vector<16x64xf32>
    %48 = vector.extract_strided_slice %3 {offsets = [1, 0], sizes = [1, 64], strides = [1, 1]} : vector<4x64xf32> to vector<1x64xf32>
    %49 = vector.broadcast %48 : vector<1x64xf32> to vector<16x64xf32>
    %50 = arith.mulf %49, %47 : vector<16x64xf32>
    %51 = arith.addf %42, %50 : vector<16x64xf32>
    %c1_i32_13 = arith.constant 1 : i32
    %52 = tpu.dynamic_rotate %10 by %c1_i32_13 dim 0 : vector<16x64xf32>, i32 -> vector<16x64xf32>
    %c1_i32_14 = arith.constant 1 : i32
    %53 = vector.broadcast %c1_i32_14 : i32 to vector<16x64xi32>
    %54 = arith.cmpi sge, %28, %53 : vector<16x64xi32>
    %cst_15 = arith.constant 0.000000e+00 : f32
    %55 = vector.broadcast %cst_15 : f32 to vector<16x64xf32>
    %56 = arith.select %54, %52, %55 : vector<16x64xi1>, vector<16x64xf32>
    %57 = vector.extract_strided_slice %3 {offsets = [2, 0], sizes = [1, 64], strides = [1, 1]} : vector<4x64xf32> to vector<1x64xf32>
    %58 = vector.broadcast %57 : vector<1x64xf32> to vector<16x64xf32>
    %59 = arith.mulf %58, %56 : vector<16x64xf32>
    %60 = arith.addf %51, %59 : vector<16x64xf32>
    %61 = arith.negf %60 : vector<16x64xf32>
    %62 = math.exp %61 : vector<16x64xf32>
    %cst_16 = arith.constant 1.000000e+00 : f32
    %63 = vector.broadcast %cst_16 : f32 to vector<16x64xf32>
    %64 = arith.addf %63, %62 : vector<16x64xf32>
    %65 = arith.divf %63, %64 : vector<16x64xf32>
    %66 = arith.mulf %60, %65 : vector<16x64xf32>
    %c0_17 = arith.constant 0 : index
    %c0_18 = arith.constant 0 : index
    %67 = vector.load %arg3[%c0_17, %c0_18] : memref<64x128xf32, #tpu.memory_space<vmem>>, vector<64x128xf32>
    %cst_19 = arith.constant dense<0.000000e+00> : vector<16x128xf32>
    %68 = tpu.matmul %66, %67, %cst_19 {dimension_numbers = #tpu.dot_dimension_numbers<[1], [0], [0], [1], [0, 0, 1, 1], [], []>} : vector<16x64xf32>, vector<64x128xf32>, vector<16x128xf32> -> vector<16x128xf32>
    %69 = vector.extract_strided_slice %68 {offsets = [0, 0], sizes = [16, 64], strides = [1, 1]} : vector<16x128xf32> to vector<16x64xf32>
    %70 = vector.broadcast %5 : vector<1x64xf32> to vector<16x64xf32>
    %71 = arith.addf %69, %70 : vector<16x64xf32>
    %cst_20 = arith.constant 0.000000e+00 : f32
    %72 = vector.broadcast %cst_20 : f32 to vector<16x64xf32>
    %73 = arith.maximumf %71, %72 : vector<16x64xf32>
    %74 = vector.broadcast %cst_20 : f32 to vector<16x64xf32>
    %75 = arith.subf %71, %74 : vector<16x64xf32>
    %76 = arith.cmpf one, %75, %75 : vector<16x64xf32>
    %77 = vector.broadcast %cst_20 : f32 to vector<16x64xf32>
    %78 = arith.addf %71, %77 : vector<16x64xf32>
    %79 = math.absf %75 : vector<16x64xf32>
    %cst_21 = arith.constant 0.000000e+00 : f32
    %80 = vector.broadcast %cst_21 : f32 to vector<16x64xf32>
    %81 = arith.subf %80, %79 : vector<16x64xf32>
    %82 = math.exp %81 : vector<16x64xf32>
    %83 = math.log1p %82 : vector<16x64xf32>
    %84 = arith.addf %73, %83 : vector<16x64xf32>
    %85 = arith.select %76, %78, %84 : vector<16x64xi1>, vector<16x64xf32>
    %86 = vector.extract_strided_slice %68 {offsets = [0, 64], sizes = [16, 16], strides = [1, 1]} : vector<16x128xf32> to vector<16x16xf32>
    %87 = vector.extract_strided_slice %68 {offsets = [0, 80], sizes = [16, 16], strides = [1, 1]} : vector<16x128xf32> to vector<16x16xf32>
    %88 = vector.extract_strided_slice %85 {offsets = [0, 0], sizes = [8, 64], strides = [1, 1]} : vector<16x64xf32> to vector<8x64xf32>
    %89 = vector.extract_strided_slice %85 {offsets = [8, 0], sizes = [8, 64], strides = [1, 1]} : vector<16x64xf32> to vector<8x64xf32>
    %90 = tpu.concatenate %88, %89 in 1 : vector<8x64xf32>, vector<8x64xf32> -> vector<8x128xf32>
    %91 = vector.extract_strided_slice %66 {offsets = [0, 0], sizes = [8, 64], strides = [1, 1]} : vector<16x64xf32> to vector<8x64xf32>
    %92 = vector.extract_strided_slice %66 {offsets = [8, 0], sizes = [8, 64], strides = [1, 1]} : vector<16x64xf32> to vector<8x64xf32>
    %93 = tpu.concatenate %91, %92 in 1 : vector<8x64xf32>, vector<8x64xf32> -> vector<8x128xf32>
    %94 = vector.extract_strided_slice %11 {offsets = [0, 0], sizes = [8, 64], strides = [1, 1]} : vector<16x64xf32> to vector<8x64xf32>
    %95 = vector.extract_strided_slice %11 {offsets = [8, 0], sizes = [8, 64], strides = [1, 1]} : vector<16x64xf32> to vector<8x64xf32>
    %96 = tpu.concatenate %94, %95 in 1 : vector<8x64xf32>, vector<8x64xf32> -> vector<8x128xf32>
    %97 = arith.mulf %85, %66 : vector<16x64xf32>
    %98 = tpu.concatenate %7, %7 in 1 : vector<16x64xf32>, vector<16x64xf32> -> vector<16x128xf32>
    %99 = tpu.concatenate %6, %6 in 1 : vector<1x64xf32>, vector<1x64xf32> -> vector<1x128xf32>
    %100 = vector.extract_strided_slice %97 {offsets = [0, 0], sizes = [8, 64], strides = [1, 1]} : vector<16x64xf32> to vector<8x64xf32>
    %101 = vector.shape_cast %100 : vector<8x64xf32> to vector<8x1x64xf32>
    %102 = vector.extract_strided_slice %86 {offsets = [0, 0], sizes = [8, 16], strides = [1, 1]} : vector<16x16xf32> to vector<8x16xf32>
    %103 = vector.shape_cast %102 : vector<8x16xf32> to vector<8x16x1xf32>
    %104 = vector.broadcast %101 : vector<8x1x64xf32> to vector<8x16x64xf32>
    %105 = vector.broadcast %103 : vector<8x16x1xf32> to vector<8x16x64xf32>
    %106 = arith.mulf %104, %105 : vector<8x16x64xf32>
    %107 = vector.extract_strided_slice %97 {offsets = [8, 0], sizes = [8, 64], strides = [1, 1]} : vector<16x64xf32> to vector<8x64xf32>
    %108 = vector.shape_cast %107 : vector<8x64xf32> to vector<8x1x64xf32>
    %109 = vector.extract_strided_slice %86 {offsets = [8, 0], sizes = [8, 16], strides = [1, 1]} : vector<16x16xf32> to vector<8x16xf32>
    %110 = vector.shape_cast %109 : vector<8x16xf32> to vector<8x16x1xf32>
    %111 = vector.broadcast %108 : vector<8x1x64xf32> to vector<8x16x64xf32>
    %112 = vector.broadcast %110 : vector<8x16x1xf32> to vector<8x16x64xf32>
    %113 = arith.mulf %111, %112 : vector<8x16x64xf32>
    %114 = tpu.concatenate %106, %113 in 2 : vector<8x16x64xf32>, vector<8x16x64xf32> -> vector<8x16x128xf32>
    %115 = vector.extract_strided_slice %87 {offsets = [0, 0], sizes = [8, 16], strides = [1, 1]} : vector<16x16xf32> to vector<8x16xf32>
    %116 = vector.shape_cast %115 : vector<8x16xf32> to vector<8x16x1xf32>
    %117 = vector.shape_cast %116 : vector<8x16x1xf32> to vector<8x16x1xf32>
    %118 = vector.broadcast %117 : vector<8x16x1xf32> to vector<8x16x64xf32>
    %119 = vector.extract_strided_slice %87 {offsets = [8, 0], sizes = [8, 16], strides = [1, 1]} : vector<16x16xf32> to vector<8x16xf32>
    %120 = vector.shape_cast %119 : vector<8x16xf32> to vector<8x16x1xf32>
    %121 = vector.shape_cast %120 : vector<8x16x1xf32> to vector<8x16x1xf32>
    %122 = vector.broadcast %121 : vector<8x16x1xf32> to vector<8x16x64xf32>
    %123 = tpu.concatenate %118, %122 in 2 : vector<8x16x64xf32>, vector<8x16x64xf32> -> vector<8x16x128xf32>
    %124 = vector.extract_strided_slice %114 {offsets = [0, 0, 0], sizes = [1, 16, 128], strides = [1, 1, 1]} : vector<8x16x128xf32> to vector<1x16x128xf32>
    %125 = vector.shape_cast %124 : vector<1x16x128xf32> to vector<16x128xf32>
    %126 = vector.extract_strided_slice %123 {offsets = [0, 0, 0], sizes = [1, 16, 128], strides = [1, 1, 1]} : vector<8x16x128xf32> to vector<1x16x128xf32>
    %127 = vector.shape_cast %126 : vector<1x16x128xf32> to vector<16x128xf32>
    %128 = arith.mulf %125, %127 : vector<16x128xf32>
    %cst_22 = arith.constant dense<0.000000e+00> : vector<128xf32>
    %129 = vector.multi_reduction <add>, %128, %cst_22 [0] : vector<16x128xf32> to vector<128xf32>
    %130 = vector.shape_cast %129 : vector<128xf32> to vector<1x128xf32>
    %131 = vector.extract_strided_slice %90 {offsets = [1, 0], sizes = [1, 128], strides = [1, 1]} : vector<8x128xf32> to vector<1x128xf32>
    %132 = vector.broadcast %131 : vector<1x128xf32> to vector<16x128xf32>
    %133 = arith.mulf %132, %98 : vector<16x128xf32>
    %134 = math.exp %133 : vector<16x128xf32>
    %135 = arith.mulf %134, %125 : vector<16x128xf32>
    %136 = vector.extract_strided_slice %114 {offsets = [1, 0, 0], sizes = [1, 16, 128], strides = [1, 1, 1]} : vector<8x16x128xf32> to vector<1x16x128xf32>
    %137 = vector.shape_cast %136 : vector<1x16x128xf32> to vector<16x128xf32>
    %138 = arith.addf %135, %137 : vector<16x128xf32>
    %139 = vector.extract_strided_slice %123 {offsets = [1, 0, 0], sizes = [1, 16, 128], strides = [1, 1, 1]} : vector<8x16x128xf32> to vector<1x16x128xf32>
    %140 = vector.shape_cast %139 : vector<1x16x128xf32> to vector<16x128xf32>
    %141 = arith.mulf %138, %140 : vector<16x128xf32>
    %cst_23 = arith.constant dense<0.000000e+00> : vector<128xf32>
    %142 = vector.multi_reduction <add>, %141, %cst_23 [0] : vector<16x128xf32> to vector<128xf32>
    %143 = vector.shape_cast %142 : vector<128xf32> to vector<1x128xf32>
    %144 = vector.extract_strided_slice %90 {offsets = [2, 0], sizes = [1, 128], strides = [1, 1]} : vector<8x128xf32> to vector<1x128xf32>
    %145 = vector.broadcast %144 : vector<1x128xf32> to vector<16x128xf32>
    %146 = arith.mulf %145, %98 : vector<16x128xf32>
    %147 = math.exp %146 : vector<16x128xf32>
    %148 = arith.mulf %147, %138 : vector<16x128xf32>
    %149 = vector.extract_strided_slice %114 {offsets = [2, 0, 0], sizes = [1, 16, 128], strides = [1, 1, 1]} : vector<8x16x128xf32> to vector<1x16x128xf32>
    %150 = vector.shape_cast %149 : vector<1x16x128xf32> to vector<16x128xf32>
    %151 = arith.addf %148, %150 : vector<16x128xf32>
    %152 = vector.extract_strided_slice %123 {offsets = [2, 0, 0], sizes = [1, 16, 128], strides = [1, 1, 1]} : vector<8x16x128xf32> to vector<1x16x128xf32>
    %153 = vector.shape_cast %152 : vector<1x16x128xf32> to vector<16x128xf32>
    %154 = arith.mulf %151, %153 : vector<16x128xf32>
    %cst_24 = arith.constant dense<0.000000e+00> : vector<128xf32>
    %155 = vector.multi_reduction <add>, %154, %cst_24 [0] : vector<16x128xf32> to vector<128xf32>
    %156 = vector.shape_cast %155 : vector<128xf32> to vector<1x128xf32>
    %157 = vector.extract_strided_slice %90 {offsets = [3, 0], sizes = [1, 128], strides = [1, 1]} : vector<8x128xf32> to vector<1x128xf32>
    %158 = vector.broadcast %157 : vector<1x128xf32> to vector<16x128xf32>
    %159 = arith.mulf %158, %98 : vector<16x128xf32>
    %160 = math.exp %159 : vector<16x128xf32>
    %161 = arith.mulf %160, %151 : vector<16x128xf32>
    %162 = vector.extract_strided_slice %114 {offsets = [3, 0, 0], sizes = [1, 16, 128], strides = [1, 1, 1]} : vector<8x16x128xf32> to vector<1x16x128xf32>
    %163 = vector.shape_cast %162 : vector<1x16x128xf32> to vector<16x128xf32>
    %164 = arith.addf %161, %163 : vector<16x128xf32>
    %165 = vector.extract_strided_slice %123 {offsets = [3, 0, 0], sizes = [1, 16, 128], strides = [1, 1, 1]} : vector<8x16x128xf32> to vector<1x16x128xf32>
    %166 = vector.shape_cast %165 : vector<1x16x128xf32> to vector<16x128xf32>
    %167 = arith.mulf %164, %166 : vector<16x128xf32>
    %cst_25 = arith.constant dense<0.000000e+00> : vector<128xf32>
    %168 = vector.multi_reduction <add>, %167, %cst_25 [0] : vector<16x128xf32> to vector<128xf32>
    %169 = vector.shape_cast %168 : vector<128xf32> to vector<1x128xf32>
    %170 = vector.extract_strided_slice %90 {offsets = [4, 0], sizes = [1, 128], strides = [1, 1]} : vector<8x128xf32> to vector<1x128xf32>
    %171 = vector.broadcast %170 : vector<1x128xf32> to vector<16x128xf32>
    %172 = arith.mulf %171, %98 : vector<16x128xf32>
    %173 = math.exp %172 : vector<16x128xf32>
    %174 = arith.mulf %173, %164 : vector<16x128xf32>
    %175 = vector.extract_strided_slice %114 {offsets = [4, 0, 0], sizes = [1, 16, 128], strides = [1, 1, 1]} : vector<8x16x128xf32> to vector<1x16x128xf32>
    %176 = vector.shape_cast %175 : vector<1x16x128xf32> to vector<16x128xf32>
    %177 = arith.addf %174, %176 : vector<16x128xf32>
    %178 = vector.extract_strided_slice %123 {offsets = [4, 0, 0], sizes = [1, 16, 128], strides = [1, 1, 1]} : vector<8x16x128xf32> to vector<1x16x128xf32>
    %179 = vector.shape_cast %178 : vector<1x16x128xf32> to vector<16x128xf32>
    %180 = arith.mulf %177, %179 : vector<16x128xf32>
    %cst_26 = arith.constant dense<0.000000e+00> : vector<128xf32>
    %181 = vector.multi_reduction <add>, %180, %cst_26 [0] : vector<16x128xf32> to vector<128xf32>
    %182 = vector.shape_cast %181 : vector<128xf32> to vector<1x128xf32>
    %183 = vector.extract_strided_slice %90 {offsets = [5, 0], sizes = [1, 128], strides = [1, 1]} : vector<8x128xf32> to vector<1x128xf32>
    %184 = vector.broadcast %183 : vector<1x128xf32> to vector<16x128xf32>
    %185 = arith.mulf %184, %98 : vector<16x128xf32>
    %186 = math.exp %185 : vector<16x128xf32>
    %187 = arith.mulf %186, %177 : vector<16x128xf32>
    %188 = vector.extract_strided_slice %114 {offsets = [5, 0, 0], sizes = [1, 16, 128], strides = [1, 1, 1]} : vector<8x16x128xf32> to vector<1x16x128xf32>
    %189 = vector.shape_cast %188 : vector<1x16x128xf32> to vector<16x128xf32>
    %190 = arith.addf %187, %189 : vector<16x128xf32>
    %191 = vector.extract_strided_slice %123 {offsets = [5, 0, 0], sizes = [1, 16, 128], strides = [1, 1, 1]} : vector<8x16x128xf32> to vector<1x16x128xf32>
    %192 = vector.shape_cast %191 : vector<1x16x128xf32> to vector<16x128xf32>
    %193 = arith.mulf %190, %192 : vector<16x128xf32>
    %cst_27 = arith.constant dense<0.000000e+00> : vector<128xf32>
    %194 = vector.multi_reduction <add>, %193, %cst_27 [0] : vector<16x128xf32> to vector<128xf32>
    %195 = vector.shape_cast %194 : vector<128xf32> to vector<1x128xf32>
    %196 = vector.extract_strided_slice %90 {offsets = [6, 0], sizes = [1, 128], strides = [1, 1]} : vector<8x128xf32> to vector<1x128xf32>
    %197 = vector.broadcast %196 : vector<1x128xf32> to vector<16x128xf32>
    %198 = arith.mulf %197, %98 : vector<16x128xf32>
    %199 = math.exp %198 : vector<16x128xf32>
    %200 = arith.mulf %199, %190 : vector<16x128xf32>
    %201 = vector.extract_strided_slice %114 {offsets = [6, 0, 0], sizes = [1, 16, 128], strides = [1, 1, 1]} : vector<8x16x128xf32> to vector<1x16x128xf32>
    %202 = vector.shape_cast %201 : vector<1x16x128xf32> to vector<16x128xf32>
    %203 = arith.addf %200, %202 : vector<16x128xf32>
    %204 = vector.extract_strided_slice %123 {offsets = [6, 0, 0], sizes = [1, 16, 128], strides = [1, 1, 1]} : vector<8x16x128xf32> to vector<1x16x128xf32>
    %205 = vector.shape_cast %204 : vector<1x16x128xf32> to vector<16x128xf32>
    %206 = arith.mulf %203, %205 : vector<16x128xf32>
    %cst_28 = arith.constant dense<0.000000e+00> : vector<128xf32>
    %207 = vector.multi_reduction <add>, %206, %cst_28 [0] : vector<16x128xf32> to vector<128xf32>
    %208 = vector.shape_cast %207 : vector<128xf32> to vector<1x128xf32>
    %209 = vector.extract_strided_slice %90 {offsets = [7, 0], sizes = [1, 128], strides = [1, 1]} : vector<8x128xf32> to vector<1x128xf32>
    %210 = vector.broadcast %209 : vector<1x128xf32> to vector<16x128xf32>
    %211 = arith.mulf %210, %98 : vector<16x128xf32>
    %212 = math.exp %211 : vector<16x128xf32>
    %213 = arith.mulf %212, %203 : vector<16x128xf32>
    %214 = vector.extract_strided_slice %114 {offsets = [7, 0, 0], sizes = [1, 16, 128], strides = [1, 1, 1]} : vector<8x16x128xf32> to vector<1x16x128xf32>
    %215 = vector.shape_cast %214 : vector<1x16x128xf32> to vector<16x128xf32>
    %216 = arith.addf %213, %215 : vector<16x128xf32>
    %217 = vector.extract_strided_slice %123 {offsets = [7, 0, 0], sizes = [1, 16, 128], strides = [1, 1, 1]} : vector<8x16x128xf32> to vector<1x16x128xf32>
    %218 = vector.shape_cast %217 : vector<1x16x128xf32> to vector<16x128xf32>
    %219 = arith.mulf %216, %218 : vector<16x128xf32>
    %cst_29 = arith.constant dense<0.000000e+00> : vector<128xf32>
    %220 = vector.multi_reduction <add>, %219, %cst_29 [0] : vector<16x128xf32> to vector<128xf32>
    %221 = vector.shape_cast %220 : vector<128xf32> to vector<1x128xf32>
    %222 = tpu.concatenate %130, %143, %156, %169, %182, %195, %208, %221 in 0 : vector<1x128xf32>, vector<1x128xf32>, vector<1x128xf32>, vector<1x128xf32>, vector<1x128xf32>, vector<1x128xf32>, vector<1x128xf32>, vector<1x128xf32> -> vector<8x128xf32>
    %223 = vector.broadcast %99 : vector<1x128xf32> to vector<8x128xf32>
    %224 = arith.mulf %93, %223 : vector<8x128xf32>
    %225 = arith.addf %222, %224 : vector<8x128xf32>
    %226 = arith.negf %96 : vector<8x128xf32>
    %227 = math.exp %226 : vector<8x128xf32>
    %cst_30 = arith.constant 1.000000e+00 : f32
    %228 = vector.broadcast %cst_30 : f32 to vector<8x128xf32>
    %229 = arith.addf %228, %227 : vector<8x128xf32>
    %230 = arith.divf %228, %229 : vector<8x128xf32>
    %231 = arith.mulf %96, %230 : vector<8x128xf32>
    %232 = arith.mulf %225, %231 : vector<8x128xf32>
    %233 = vector.extract_strided_slice %232 {offsets = [0, 0], sizes = [8, 64], strides = [1, 1]} : vector<8x128xf32> to vector<8x64xf32>
    %234 = vector.extract_strided_slice %232 {offsets = [0, 64], sizes = [8, 64], strides = [1, 1]} : vector<8x128xf32> to vector<8x64xf32>
    %235 = tpu.concatenate %233, %234 in 0 : vector<8x64xf32>, vector<8x64xf32> -> vector<16x64xf32>
    %c0_31 = arith.constant 0 : index
    %c0_32 = arith.constant 0 : index
    %236 = vector.load %arg5[%c0_31, %c0_32] : memref<64x32xf32, #tpu.memory_space<vmem>>, vector<64x32xf32>
    %cst_33 = arith.constant dense<0.000000e+00> : vector<16x32xf32>
    %237 = tpu.matmul %235, %236, %cst_33 {dimension_numbers = #tpu.dot_dimension_numbers<[1], [0], [0], [1], [0, 0, 1, 1], [], []>} : vector<16x64xf32>, vector<64x32xf32>, vector<16x32xf32> -> vector<16x32xf32>
    %238 = vector.shape_cast %237 : vector<16x32xf32> to vector<2x8x32xf32>
    %c0_34 = arith.constant 0 : index
    %c0_35 = arith.constant 0 : index
    %c0_36 = arith.constant 0 : index
    %239 = vector.load %arg6[%c0_34, %c0_35, %c0_36] : memref<2x8x32xf32, #tpu.memory_space<vmem>>, vector<2x8x32xf32>
    tpu.vector_store %arg6[%c0_34, %c0_35, %c0_36], %238 {strides = array<i32>} : memref<2x8x32xf32, #tpu.memory_space<vmem>>, vector<2x8x32xf32>,
    return
  }
  func.func @transform_0(%arg0: i32) -> (i32, i32, i32) {
    %c0_i32 = arith.constant 0 : i32
    %c0_i32_0 = arith.constant 0 : i32
    %c0_i32_1 = arith.constant 0 : i32
    %c0_i32_2 = arith.constant 0 : i32
    return %c0_i32, %c0_i32_0, %c0_i32_1 : i32, i32, i32
  }
  func.func @transform_1(%arg0: i32) -> (i32, i32) {
    %c0_i32 = arith.constant 0 : i32
    %c0_i32_0 = arith.constant 0 : i32
    %c0_i32_1 = arith.constant 0 : i32
    return %c0_i32, %c0_i32_0 : i32, i32
  }
  func.func @transform_2(%arg0: i32) -> (i32, i32) {
    %c0_i32 = arith.constant 0 : i32
    %c0_i32_0 = arith.constant 0 : i32
    %c0_i32_1 = arith.constant 0 : i32
    return %c0_i32, %c0_i32_0 : i32, i32
  }
  func.func @transform_3(%arg0: i32) -> (i32, i32) {
    %c0_i32 = arith.constant 0 : i32
    %c0_i32_0 = arith.constant 0 : i32
    %c0_i32_1 = arith.constant 0 : i32
    return %c0_i32, %c0_i32_0 : i32, i32
  }
  func.func @transform_4(%arg0: i32) -> (i32, i32) {
    %c0_i32 = arith.constant 0 : i32
    %c0_i32_0 = arith.constant 0 : i32
    %c0_i32_1 = arith.constant 0 : i32
    return %c0_i32, %c0_i32_0 : i32, i32
  }
  func.func @transform_5(%arg0: i32) -> (i32, i32, i32) {
    %c0_i32 = arith.constant 0 : i32
    %c0_i32_0 = arith.constant 0 : i32
    %c0_i32_1 = arith.constant 0 : i32
    %c0_i32_2 = arith.constant 0 : i32
    return %c0_i32, %c0_i32_0, %c0_i32_1 : i32, i32, i32
  }
}

</mosaic_0001>

<llo_original>
// kernel: tpu_custom_call.1
$region0: #{tpu_custom_call.1}
  #allocation0 [shape = 'u32[]', space=smem, size = 0x4, offset = 0x4, fixed_abs, tag = 'smem constant byte address 0x4 - core index']
  #allocation1 [shape = 'u32[72,128]{1,0:T(1,128)}', space=vmem, size = 0x9000, scoped, tag = 'internal scratch']
  %s0 = inlined_call_operand.hbm [shape: f32[2,8,32], index: 0, kind: input, shape index: {}]
  %s1 = inlined_call_operand.vmem [shape: f32[32,128], index: 1, kind: input, shape index: {}]
  %s2 = inlined_call_operand.vmem [shape: f32[64,128], index: 2, kind: input, shape index: {}]
  %s3 = inlined_call_operand.hbm [shape: f32[24,64], index: 3, kind: input, shape index: {}]
  %s4 = inlined_call_operand.vmem [shape: f32[64,32], index: 4, kind: input, shape index: {}]
  %s5 = inlined_call_operand.hbm [shape: f32[2,8,32], index: 5, kind: output, shape index: {}]
  %s6 = sld [smem:[#allocation0]]
  $region38: #{tpu_custom_call.1} parent=0
    _
  %s8 = ssub.s32 1, %s6
  %s9 = scalar_select 0, %s8, %s6
  $region1: #{tpu_custom_call.1} parent=0
    #allocation2 [shape = 'u8[8192]{0}', space=vmem, size = 0x2000, scoped, tag = 'input window, operand 0, single buffered']
    #allocation3 [shape = 's32[1]{0}', space=sflag, size = 0x4, scoped, tag = 'scoped memory for tpu_custom_call.1']
    #allocation4 [shape = 's32[1]{0}', space=sflag, size = 0x4, scoped, tag = 'scoped memory for tpu_custom_call.1']
    #allocation5 [shape = 'u8[12288]{0}', space=vmem, size = 0x3000, scoped, tag = 'input window, operand 3, single buffered']
    #allocation6 [shape = 's32[1]{0}', space=sflag, size = 0x4, scoped, tag = 'scoped memory for tpu_custom_call.1']
    #allocation7 [shape = 'u8[8192]{0}', space=vmem, size = 0x2000, scoped, tag = 'output window, operand 0, single buffered']
    %10 = vsyncpa [#allocation3], 0
    %11 = vsyncpa [#allocation6], 0
    %12 = vsyncpa [#allocation4], 0
    // Predicated region
    $region2: #{tpu_custom_call.1} parent=1 // pred_check
      _
    $region3: #{tpu_custom_call.1} parent=1 // pred_check_branch
      %14 = sbr.rel (0) target = $region5
    $region4: #{tpu_custom_call.1} parent=1 // pred_region
      %16 = vsyncadd [#allocation3], 0
      %s17 = sshll.u32 %s0, 4
      %s18 = int_to_ptr.hbm [resolvable:$true] %s17
      %s19 = sshll.u32 [#allocation2], 4
      %s20 = int_to_ptr.vmem [resolvable:$true] %s19
      %25 = dma.hbm_to_vmem [thread:$0]  %s18, 256, %s20, [#allocation3], 128, 128, 8
    $region5: #{tpu_custom_call.1} parent=1 // pred_fallthru
      _
    // Predicated region
    $region6: #{tpu_custom_call.1} parent=1 // pred_check
      _
    $region7: #{tpu_custom_call.1} parent=1 // pred_check_branch
      %27 = sbr.rel (0) target = $region9
    $region8: #{tpu_custom_call.1} parent=1 // pred_region
      _
    $region9: #{tpu_custom_call.1} parent=1 // pred_fallthru
      _
    // Predicated region
    $region10: #{tpu_custom_call.1} parent=1 // pred_check
      _
    $region11: #{tpu_custom_call.1} parent=1 // pred_check_branch
      %29 = sbr.rel (0) target = $region13
    $region12: #{tpu_custom_call.1} parent=1 // pred_region
      _
    $region13: #{tpu_custom_call.1} parent=1 // pred_fallthru
      _
    // Predicated region
    $region14: #{tpu_custom_call.1} parent=1 // pred_check
      _
    $region15: #{tpu_custom_call.1} parent=1 // pred_check_branch
      %31 = sbr.rel (0) target = $region17
    $region16: #{tpu_custom_call.1} parent=1 // pred_region
      %33 = vsyncadd [#allocation6], 0
      %s34 = sshll.u32 %s3, 4
      %s35 = int_to_ptr.hbm [resolvable:$true] %s34
      %s36 = sshll.u32 [#allocation5], 4
      %s37 = int_to_ptr.vmem [resolvable:$true] %s36
      %42 = dma.hbm_to_vmem [thread:$0]  %s35, 384, %s37, [#allocation6], 128, 128, 8
    $region17: #{tpu_custom_call.1} parent=1 // pred_fallthru
      _
    // Predicated region
    $region18: #{tpu_custom_call.1} parent=1 // pred_check
      _
    $region19: #{tpu_custom_call.1} parent=1 // pred_check_branch
      %44 = sbr.rel (0) target = $region21
    $region20: #{tpu_custom_call.1} parent=1 // pred_region
      _
    $region21: #{tpu_custom_call.1} parent=1 // pred_fallthru
      _
    // Predicated region
    $region22: #{tpu_custom_call.1} parent=1 // pred_check
      _
    $region23: #{tpu_custom_call.1} parent=1 // pred_check_branch
      %46 = sbr.rel (0) target = $region25
    $region24: #{tpu_custom_call.1} parent=1 // pred_region
      %48 = dma.done [#allocation3], 256
    $region25: #{tpu_custom_call.1} parent=1 // pred_fallthru
      _
    // Predicated region
    $region26: #{tpu_custom_call.1} parent=1 // pred_check
      _
    $region27: #{tpu_custom_call.1} parent=1 // pred_check_branch
      %50 = sbr.rel (0) target = $region29
    $region28: #{tpu_custom_call.1} parent=1 // pred_region
      %52 = dma.done [#allocation6], 384
    $region29: #{tpu_custom_call.1} parent=1 // pred_fallthru
      _
    %v53 = vld [vmem:[#allocation2] sm:$0xff]
    %v54 = vld [vmem:[#allocation2 + $0x8] sm:$0xff]
    %v55 = vld [vmem:[#allocation5] sm:$0xff]
    %v56 = vld [vmem:[#allocation5 + $0x8] sm:$0xff]
    %v57 = vld [vmem:[#allocation5 + $0x10] sm:$0xff]
    %v58 = vld [vmem:[%s1] sm:$0xff]
    %v59 = vld [vmem:[%s1 + $0x8] sm:$0xff]
    %v60 = vld [vmem:[%s1 + $0x10] sm:$0xff]
    %v61 = vld [vmem:[%s1 + $0x18] sm:$0xff]
    %vm62 = vcmask 261120
    %v64 = vsel %vm62, %v53, 0
    %v67 = vsel %vm62, %v54, 0
    %69 = vmatpush.msra.mxu0 0.0
    %70 = vmatpush.msra.mxu0 0.0
    %71 = vmatpush.msra.mxu0 0.0
    %72 = vmatpush.msra.mxu0 0.0
    %73 = vmatpush.msra.mxu0 0.0
    %74 = vmatpush.msra.mxu0 0.0
    %75 = vmatpush.msra.mxu0 0.0
    %76 = vmatpush.msra.mxu0 0.0
    %77 = vmatpush.msra.mxu0 0.0
    %78 = vmatpush.msra.mxu0 0.0
    %79 = vmatpush.msra.mxu0 0.0
    %80 = vmatpush.msra.mxu0 0.0
    %81 = vmatpush.msra.mxu0 %v61
    %82 = vmatpush.msra.mxu0 %v60
    %83 = vmatpush.msra.mxu0 %v59
    %84 = vmatpush.msra.mxu0 %v58
    %85 = vmatmul.f32.gmra.mxu0 %v64
    %v86 = vpop.f32.mrf.mxu0
    %v87 = vadd.f32 0.0, %v86
    %88 = vmatmul.f32.gmra.mxu0 %v67
    %v89 = vpop.f32.mrf.mxu0
    %v90 = vadd.f32 0.0, %v89
    %91 = vdwg.mxu0
    %v92 = vlaneseq
    %v93 = vshrl.u32 %v92, 7
    %v94 = vadd.s32 %v93, 8
    %vm95 = vcmp.lt.s32.totalorder %v93, 0
    %v96 = vsub.s32 0, %v93
    %v97 = vsel %vm95, %v96, %v93
    %v98 = vshrl.u32 %v97, 3
    %v99 = vand.u32 %v97, 7
    %v100 = vsub.s32 0, %v99
    %v101 = vsel %vm95, %v100, %v99
    %vm102 = vcmp.lt.s32.totalorder %v94, 0
    %v103 = vsub.s32 0, %v94
    %v104 = vsel %vm102, %v103, %v94
    %v105 = vshrl.u32 %v104, 3
    %v106 = vand.u32 %v104, 7
    %v107 = vsub.s32 0, %v106
    %v108 = vsel %vm102, %v107, %v106
    %vm109 = vcmp.ne.s32.totalorder %v101, 0
    %vm110 = vcmp.ne.s32.totalorder %v108, 0
    %vm111 = vcmp.lt.s32.totalorder %v101, 0
    %vm112 = vcmp.lt.s32.totalorder %v108, 0
    %vm113 = vmand %vm111, %vm109
    %vm114 = vmand %vm112, %vm110
    %v115 = vadd.s32 %v101, 8
    %v116 = vadd.s32 %v108, 8
    %v117 = vsel %vm113, %v115, %v101
    %v118 = vsel %vm114, %v116, %v108
    %v119 = vperm.slane %v55, 3
    %v120 = vmul.f32 %v87, %v119
    %v121 = vmul.f32 %v90, %v119
    %v122 = vperm.slane %v55, 4
    %v123 = vadd.f32 %v120, %v122
    %v124 = vadd.f32 %v121, %v122
    %v125 = vrot.slane %v87, 5
    %v126 = vrot.slane %v90, 5
    %vm127 = vcmp.lt.s32.totalorder %v93, 3
    %v128 = vsel %vm127, %v125, %v126
    %v129 = vsel %vm127, %v126, %v125
    %vm130 = vcmp.ge.s32.totalorder %v117, 3
    %vm131 = vcmp.ge.s32.totalorder %v118, 3
    %v132 = vsel %vm130, %v129, 0.0
    %v133 = vsel %vm131, %v128, 0.0
    %v134 = vperm.slane %v55, 0
    %v135 = vmul.f32 %v134, %v132
    %v136 = vmul.f32 %v134, %v133
    %v137 = vadd.f32 %v123, %v135
    %v138 = vadd.f32 %v124, %v136
    %v139 = vrot.slane %v87, 6
    %v140 = vrot.slane %v90, 6
    %vm141 = vcmp.lt.s32.totalorder %v93, 2
    %v142 = vsel %vm141, %v139, %v140
    %v143 = vsel %vm141, %v140, %v139
    %vm144 = vcmp.ge.s32.totalorder %v117, 2
    %vm145 = vcmp.ge.s32.totalorder %v118, 2
    %v146 = vsel %vm144, %v143, 0.0
    %v147 = vsel %vm145, %v142, 0.0
    %v148 = vperm.slane %v55, 1
    %v149 = vmul.f32 %v148, %v146
    %v150 = vmul.f32 %v148, %v147
    %v151 = vadd.f32 %v137, %v149
    %v152 = vadd.f32 %v138, %v150
    %v153 = vrot.slane %v87, 7
    %v154 = vrot.slane %v90, 7
    %vm155 = vcmp.lt.s32.totalorder %v93, 1
    %v156 = vsel %vm155, %v153, %v154
    %v157 = vsel %vm155, %v154, %v153
    %vm158 = vcmp.ge.s32.totalorder %v117, 1
    %vm159 = vcmp.ge.s32.totalorder %v118, 1
    %v160 = vsel %vm158, %v157, 0.0
    %v161 = vsel %vm159, %v156, 0.0
    %v162 = vperm.slane %v55, 2
    %v163 = vmul.f32 %v162, %v160
    %v164 = vmul.f32 %v162, %v161
    %v165 = vadd.f32 %v151, %v163
    %v166 = vadd.f32 %v152, %v164
    %v167 = vxor.u32 %v165, 2147483648
    %v168 = vxor.u32 %v166, 2147483648
    %v169 = vmul.f32 %v167, 1.442695
    %v170 = vpow.pop %v169
    %v171 = vmul.f32 %v168, 1.442695
    %v172 = vpow.pop %v171
    %v173 = vadd.f32 %v170, 1.0
    %v174 = vadd.f32 %v172, 1.0
    %v175 = vrcp.pop %v173
    %v176 = vmul.f32 %v173, %v175
    %v177 = vsub.f32 1.0, %v176
    %v178 = vmul.f32 %v175, %v177
    %v179 = vadd.f32 %v175, %v178
    %vm180 = vweird.f32 %v173
    %vm181 = vweird.f32 %v175
    %vm182 = vmor %vm180, %vm181
    %v183 = vsel %vm182, %v175, %v179
    %v184 = vand.u32 2147483647, %v173
    %vm185 = vcmp.eq.f32.partialorder %v184, 8.507059e+37
    %v186 = vand.u32 %v173, 2147483648
    %v187 = vor.u32 1.1754944e-38, %v186
    %v188 = vsel %vm185, %v187, %v183
    %v189 = vmul.f32 1.0, %v188
    %v190 = vrcp.pop %v174
    %v191 = vmul.f32 %v174, %v190
    %v192 = vsub.f32 1.0, %v191
    %v193 = vmul.f32 %v190, %v192
    %v194 = vadd.f32 %v190, %v193
    %vm195 = vweird.f32 %v174
    %vm196 = vweird.f32 %v190
    %vm197 = vmor %vm195, %vm196
    %v198 = vsel %vm197, %v190, %v194
    %v199 = vand.u32 2147483647, %v174
    %vm200 = vcmp.eq.f32.partialorder %v199, 8.507059e+37
    %v201 = vand.u32 %v174, 2147483648
    %v202 = vor.u32 1.1754944e-38, %v201
    %v203 = vsel %vm200, %v202, %v198
    %v204 = vmul.f32 1.0, %v203
    %v205 = vmul.f32 %v165, %v189
    %v206 = vmul.f32 %v166, %v204
    %v207 = vld [vmem:[%s2] sm:$0xff]
    %v208 = vld [vmem:[%s2 + $0x8] sm:$0xff]
    %v209 = vld [vmem:[%s2 + $0x10] sm:$0xff]
    %v210 = vld [vmem:[%s2 + $0x18] sm:$0xff]
    %v211 = vld [vmem:[%s2 + $0x20] sm:$0xff]
    %v212 = vld [vmem:[%s2 + $0x28] sm:$0xff]
    %v213 = vld [vmem:[%s2 + $0x30] sm:$0xff]
    %v214 = vld [vmem:[%s2 + $0x38] sm:$0xff]
    %vm215 = vcmask 523264
    %v217 = vsel %vm215, %v205, 0
    %v220 = vsel %vm215, %v206, 0
    %222 = vmatpush.msra.mxu0 0.0
    %223 = vmatpush.msra.mxu0 0.0
    %224 = vmatpush.msra.mxu0 0.0
    %225 = vmatpush.msra.mxu0 0.0
    %226 = vmatpush.msra.mxu0 0.0
    %227 = vmatpush.msra.mxu0 0.0
    %228 = vmatpush.msra.mxu0 0.0
    %229 = vmatpush.msra.mxu0 0.0
    %230 = vmatpush.msra.mxu0 %v214
    %231 = vmatpush.msra.mxu0 %v213
    %232 = vmatpush.msra.mxu0 %v212
    %233 = vmatpush.msra.mxu0 %v211
    %234 = vmatpush.msra.mxu0 %v210
    %235 = vmatpush.msra.mxu0 %v209
    %236 = vmatpush.msra.mxu0 %v208
    %237 = vmatpush.msra.mxu0 %v207
    %238 = vmatmul.f32.gmra.mxu0 %v217
    %v239 = vpop.f32.mrf.mxu0
    %v240 = vadd.f32 0.0, %v239
    %241 = vmatmul.f32.gmra.mxu0 %v220
    %v242 = vpop.f32.mrf.mxu0
    %v243 = vadd.f32 0.0, %v242
    %244 = vdwg.mxu0
    %v245 = vperm.slane %v55, 5
    %v246 = vadd.f32 %v240, %v245
    %v247 = vadd.f32 %v243, %v245
    %v248 = vmax.f32 %v246, 0.0
    %v249 = vmax.f32 %v247, 0.0
    %vm250 = vcmp.ne.f32.partialorder %v246, %v246
    %vm251 = vcmp.ne.f32.partialorder %v247, %v247
    %v252 = vadd.f32 %v246, 0.0
    %v253 = vadd.f32 %v247, 0.0
    %v254 = vand.u32 2147483647, %v246
    %v255 = vand.u32 2147483647, %v247
    %v256 = vsub.f32 0.0, %v254
    %v257 = vsub.f32 0.0, %v255
    %v258 = vmul.f32 %v256, 1.442695
    %v259 = vpow.pop %v258
    %v260 = vmul.f32 %v257, 1.442695
    %v261 = vpow.pop %v260
    %v262 = vadd.f32 %v259, 1.0
    %v263 = vlog2.pop %v262
    %v264 = vmul.f32 %v263, 0.6931472
    %v265 = vmul.f32 -0.5, %v259
    %v266 = vadd.f32 %v265, 1.0
    %v267 = vmul.f32 %v266, %v259
    %v268 = vand.u32 2147483647, %v259
    %vm269 = vcmp.lt.f32.partialorder %v268, 0.0004427343
    %v270 = vsel %vm269, %v267, %v264
    %v271 = vadd.f32 %v261, 1.0
    %v272 = vlog2.pop %v271
    %v273 = vmul.f32 %v272, 0.6931472
    %v274 = vmul.f32 -0.5, %v261
    %v275 = vadd.f32 %v274, 1.0
    %v276 = vmul.f32 %v275, %v261
    %v277 = vand.u32 2147483647, %v261
    %vm278 = vcmp.lt.f32.partialorder %v277, 0.0004427343
    %v279 = vsel %vm278, %v276, %v273
    %v280 = vadd.f32 %v248, %v270
    %v281 = vadd.f32 %v249, %v279
    %v282 = vsel %vm250, %v252, %v280
    %v283 = vsel %vm251, %v253, %v281
    %285 = vrot.lane.b32.xlu0 %v283, 64
    %v286 = vpop.permute.xlu0 %285
    %v288 = vsel %vm215, %v282, %v286
    %289 = vrot.lane.b32.xlu0 %v206, 64
    %v290 = vpop.permute.xlu0 %289
    %v292 = vsel %vm215, %v205, %v290
    %294 = vrot.lane.b32.xlu0 %v87, 64
    %v295 = vpop.permute.xlu0 %294
    %v297 = vsel %vm215, %v295, %v90
    %v298 = vmul.f32 %v282, %v205
    %v299 = vmul.f32 %v283, %v206
    %302 = vrot.lane.b32.xlu0 %v56, 64
    %v303 = vpop.permute.xlu0 %302
    %304 = vrot.lane.b32.xlu0 %v57, 64
    %v305 = vpop.permute.xlu0 %304
    %v308 = vsel %vm215, %v56, %v303
    %v309 = vsel %vm215, %v57, %v305
    %311 = vrot.lane.b32.xlu0 %v55, 64
    %v312 = vpop.permute.xlu0 %311
    %v314 = vsel %vm215, %v55, %v312
    %v316 = vrot.slane %v298, 1
    %v317 = vrot.slane %v298, 2
    %v318 = vrot.slane %v298, 3
    %v319 = vrot.slane %v298, 4
    %v320 = vrot.slane %v298, 5
    %v321 = vrot.slane %v298, 6
    %v322 = vrot.slane %v298, 7
    %v323 = vperm.slane %v240, 0
    %v324 = vlaneseq
    %v325 = vshrl.u32 %v324, 7
    %v326 = vadd.s32 %v325, 64
    %327 = vset.pattern.permute.xlu0 %v326
    %328 = vperm.xlu0 %327, %v323
    %v329 = vpop.permute.xlu0 %328
    %v330 = vlaneseq
    %v331 = vshrl.u32 %v330, 7
    %v332 = vadd.s32 %v331, 72
    %333 = vset.pattern.permute.xlu0 %v332
    %334 = vperm.xlu0 %333, %v323
    %v335 = vpop.permute.xlu0 %334
    %v336 = vperm.slane %v240, 1
    %v337 = vlaneseq
    %v338 = vshrl.u32 %v337, 7
    %v339 = vadd.s32 %v338, 64
    %340 = vset.pattern.permute.xlu0 %v339
    %341 = vperm.xlu0 %340, %v336
    %v342 = vpop.permute.xlu0 %341
    %v343 = vlaneseq
    %v344 = vshrl.u32 %v343, 7
    %v345 = vadd.s32 %v344, 72
    %346 = vset.pattern.permute.xlu0 %v345
    %347 = vperm.xlu0 %346, %v336
    %v348 = vpop.permute.xlu0 %347
    %v349 = vperm.slane %v240, 2
    %v350 = vlaneseq
    %v351 = vshrl.u32 %v350, 7
    %v352 = vadd.s32 %v351, 64
    %353 = vset.pattern.permute.xlu0 %v352
    %354 = vperm.xlu0 %353, %v349
    %v355 = vpop.permute.xlu0 %354
    %v356 = vlaneseq
    %v357 = vshrl.u32 %v356, 7
    %v358 = vadd.s32 %v357, 72
    %359 = vset.pattern.permute.xlu0 %v358
    %360 = vperm.xlu0 %359, %v349
    %v361 = vpop.permute.xlu0 %360
    %v362 = vperm.slane %v240, 3
    %v363 = vlaneseq
    %v364 = vshrl.u32 %v363, 7
    %v365 = vadd.s32 %v364, 64
    %366 = vset.pattern.permute.xlu0 %v365
    %367 = vperm.xlu0 %366, %v362
    %v368 = vpop.permute.xlu0 %367
    %v369 = vlaneseq
    %v370 = vshrl.u32 %v369, 7
    %v371 = vadd.s32 %v370, 72
    %372 = vset.pattern.permute.xlu0 %v371
    %373 = vperm.xlu0 %372, %v362
    %v374 = vpop.permute.xlu0 %373
    %v375 = vperm.slane %v240, 4
    %v376 = vlaneseq
    %v377 = vshrl.u32 %v376, 7
    %v378 = vadd.s32 %v377, 64
    %379 = vset.pattern.permute.xlu0 %v378
    %380 = vperm.xlu0 %379, %v375
    %v381 = vpop.permute.xlu0 %380
    %v382 = vlaneseq
    %v383 = vshrl.u32 %v382, 7
    %v384 = vadd.s32 %v383, 72
    %385 = vset.pattern.permute.xlu0 %v384
    %386 = vperm.xlu0 %385, %v375
    %v387 = vpop.permute.xlu0 %386
    %v388 = vperm.slane %v240, 5
    %v389 = vlaneseq
    %v390 = vshrl.u32 %v389, 7
    %v391 = vadd.s32 %v390, 64
    %392 = vset.pattern.permute.xlu0 %v391
    %393 = vperm.xlu0 %392, %v388
    %v394 = vpop.permute.xlu0 %393
    %v395 = vlaneseq
    %v396 = vshrl.u32 %v395, 7
    %v397 = vadd.s32 %v396, 72
    %398 = vset.pattern.permute.xlu0 %v397
    %399 = vperm.xlu0 %398, %v388
    %v400 = vpop.permute.xlu0 %399
    %v401 = vperm.slane %v240, 6
    %v402 = vlaneseq
    %v403 = vshrl.u32 %v402, 7
    %v404 = vadd.s32 %v403, 64
    %405 = vset.pattern.permute.xlu0 %v404
    %406 = vperm.xlu0 %405, %v401
    %v407 = vpop.permute.xlu0 %406
    %v408 = vlaneseq
    %v409 = vshrl.u32 %v408, 7
    %v410 = vadd.s32 %v409, 72
    %411 = vset.pattern.permute.xlu0 %v410
    %412 = vperm.xlu0 %411, %v401
    %v413 = vpop.permute.xlu0 %412
    %v414 = vperm.slane %v240, 7
    %v415 = vlaneseq
    %v416 = vshrl.u32 %v415, 7
    %v417 = vadd.s32 %v416, 64
    %418 = vset.pattern.permute.xlu0 %v417
    %419 = vperm.xlu0 %418, %v414
    %v420 = vpop.permute.xlu0 %419
    %v421 = vlaneseq
    %v422 = vshrl.u32 %v421, 7
    %v423 = vadd.s32 %v422, 72
    %424 = vset.pattern.permute.xlu0 %v423
    %425 = vperm.xlu0 %424, %v414
    %v426 = vpop.permute.xlu0 %425
    %v427 = vperm.slane %v298, 0
    %v428 = vperm.slane %v316, 0
    %v429 = vperm.slane %v317, 0
    %v430 = vperm.slane %v318, 0
    %v431 = vperm.slane %v319, 0
    %v432 = vperm.slane %v320, 0
    %v433 = vperm.slane %v321, 0
    %v434 = vperm.slane %v322, 0
    %v443 = vmul.f32 %v427, %v329
    %v444 = vmul.f32 %v427, %v335
    %v445 = vmul.f32 %v428, %v342
    %v446 = vmul.f32 %v428, %v348
    %v447 = vmul.f32 %v429, %v355
    %v448 = vmul.f32 %v429, %v361
    %v449 = vmul.f32 %v430, %v368
    %v450 = vmul.f32 %v430, %v374
    %v451 = vmul.f32 %v431, %v381
    %v452 = vmul.f32 %v431, %v387
    %v453 = vmul.f32 %v432, %v394
    %v454 = vmul.f32 %v432, %v400
    %v455 = vmul.f32 %v433, %v407
    %v456 = vmul.f32 %v433, %v413
    %v457 = vmul.f32 %v434, %v420
    %v458 = vmul.f32 %v434, %v426
    %v460 = vrot.slane %v299, 1
    %v461 = vrot.slane %v299, 2
    %v462 = vrot.slane %v299, 3
    %v463 = vrot.slane %v299, 4
    %v464 = vrot.slane %v299, 5
    %v465 = vrot.slane %v299, 6
    %v466 = vrot.slane %v299, 7
    %v467 = vperm.slane %v243, 0
    %v468 = vlaneseq
    %v469 = vshrl.u32 %v468, 7
    %v470 = vadd.s32 %v469, 64
    %471 = vset.pattern.permute.xlu0 %v470
    %472 = vperm.xlu0 %471, %v467
    %v473 = vpop.permute.xlu0 %472
    %v474 = vlaneseq
    %v475 = vshrl.u32 %v474, 7
    %v476 = vadd.s32 %v475, 72
    %477 = vset.pattern.permute.xlu0 %v476
    %478 = vperm.xlu0 %477, %v467
    %v479 = vpop.permute.xlu0 %478
    %v480 = vperm.slane %v243, 1
    %v481 = vlaneseq
    %v482 = vshrl.u32 %v481, 7
    %v483 = vadd.s32 %v482, 64
    %484 = vset.pattern.permute.xlu0 %v483
    %485 = vperm.xlu0 %484, %v480
    %v486 = vpop.permute.xlu0 %485
    %v487 = vlaneseq
    %v488 = vshrl.u32 %v487, 7
    %v489 = vadd.s32 %v488, 72
    %490 = vset.pattern.permute.xlu0 %v489
    %491 = vperm.xlu0 %490, %v480
    %v492 = vpop.permute.xlu0 %491
    %v493 = vperm.slane %v243, 2
    %v494 = vlaneseq
    %v495 = vshrl.u32 %v494, 7
    %v496 = vadd.s32 %v495, 64
    %497 = vset.pattern.permute.xlu0 %v496
    %498 = vperm.xlu0 %497, %v493
    %v499 = vpop.permute.xlu0 %498
    %v500 = vlaneseq
    %v501 = vshrl.u32 %v500, 7
    %v502 = vadd.s32 %v501, 72
    %503 = vset.pattern.permute.xlu0 %v502
    %504 = vperm.xlu0 %503, %v493
    %v505 = vpop.permute.xlu0 %504
    %v506 = vperm.slane %v243, 3
    %v507 = vlaneseq
    %v508 = vshrl.u32 %v507, 7
    %v509 = vadd.s32 %v508, 64
    %510 = vset.pattern.permute.xlu0 %v509
    %511 = vperm.xlu0 %510, %v506
    %v512 = vpop.permute.xlu0 %511
    %v513 = vlaneseq
    %v514 = vshrl.u32 %v513, 7
    %v515 = vadd.s32 %v514, 72
    %516 = vset.pattern.permute.xlu0 %v515
    %517 = vperm.xlu0 %516, %v506
    %v518 = vpop.permute.xlu0 %517
    %v519 = vperm.slane %v243, 4
    %v520 = vlaneseq
    %v521 = vshrl.u32 %v520, 7
    %v522 = vadd.s32 %v521, 64
    %523 = vset.pattern.permute.xlu0 %v522
    %524 = vperm.xlu0 %523, %v519
    %v525 = vpop.permute.xlu0 %524
    %v526 = vlaneseq
    %v527 = vshrl.u32 %v526, 7
    %v528 = vadd.s32 %v527, 72
    %529 = vset.pattern.permute.xlu0 %v528
    %530 = vperm.xlu0 %529, %v519
    %v531 = vpop.permute.xlu0 %530
    %v532 = vperm.slane %v243, 5
    %v533 = vlaneseq
    %v534 = vshrl.u32 %v533, 7
    %v535 = vadd.s32 %v534, 64
    %536 = vset.pattern.permute.xlu0 %v535
    %537 = vperm.xlu0 %536, %v532
    %v538 = vpop.permute.xlu0 %537
    %v539 = vlaneseq
    %v540 = vshrl.u32 %v539, 7
    %v541 = vadd.s32 %v540, 72
    %542 = vset.pattern.permute.xlu0 %v541
    %543 = vperm.xlu0 %542, %v532
    %v544 = vpop.permute.xlu0 %543
    %v545 = vperm.slane %v243, 6
    %v546 = vlaneseq
    %v547 = vshrl.u32 %v546, 7
    %v548 = vadd.s32 %v547, 64
    %549 = vset.pattern.permute.xlu0 %v548
    %550 = vperm.xlu0 %549, %v545
    %v551 = vpop.permute.xlu0 %550
    %v552 = vlaneseq
    %v553 = vshrl.u32 %v552, 7
    %v554 = vadd.s32 %v553, 72
    %555 = vset.pattern.permute.xlu0 %v554
    %556 = vperm.xlu0 %555, %v545
    %v557 = vpop.permute.xlu0 %556
    %v558 = vperm.slane %v243, 7
    %v559 = vlaneseq
    %v560 = vshrl.u32 %v559, 7
    %v561 = vadd.s32 %v560, 64
    %562 = vset.pattern.permute.xlu0 %v561
    %563 = vperm.xlu0 %562, %v558
    %v564 = vpop.permute.xlu0 %563
    %v565 = vlaneseq
    %v566 = vshrl.u32 %v565, 7
    %v567 = vadd.s32 %v566, 72
    %568 = vset.pattern.permute.xlu0 %v567
    %569 = vperm.xlu0 %568, %v558
    %v570 = vpop.permute.xlu0 %569
    %v571 = vperm.slane %v299, 0
    %v572 = vperm.slane %v460, 0
    %v573 = vperm.slane %v461, 0
    %v574 = vperm.slane %v462, 0
    %v575 = vperm.slane %v463, 0
    %v576 = vperm.slane %v464, 0
    %v577 = vperm.slane %v465, 0
    %v578 = vperm.slane %v466, 0
    %v587 = vmul.f32 %v571, %v473
    %v588 = vmul.f32 %v571, %v479
    %v589 = vmul.f32 %v572, %v486
    %v590 = vmul.f32 %v572, %v492
    %v591 = vmul.f32 %v573, %v499
    %v592 = vmul.f32 %v573, %v505
    %v593 = vmul.f32 %v574, %v512
    %v594 = vmul.f32 %v574, %v518
    %v595 = vmul.f32 %v575, %v525
    %v596 = vmul.f32 %v575, %v531
    %v597 = vmul.f32 %v576, %v538
    %v598 = vmul.f32 %v576, %v544
    %v599 = vmul.f32 %v577, %v551
    %v600 = vmul.f32 %v577, %v557
    %v601 = vmul.f32 %v578, %v564
    %v602 = vmul.f32 %v578, %v570
    %619 = vrot.lane.b32.xlu0 %v587, 64
    %v620 = vpop.permute.xlu0 %619
    %621 = vrot.lane.b32.xlu0 %v588, 64
    %v622 = vpop.permute.xlu0 %621
    %623 = vrot.lane.b32.xlu0 %v589, 64
    %v624 = vpop.permute.xlu0 %623
    %625 = vrot.lane.b32.xlu0 %v590, 64
    %v626 = vpop.permute.xlu0 %625
    %627 = vrot.lane.b32.xlu0 %v591, 64
    %v628 = vpop.permute.xlu0 %627
    %629 = vrot.lane.b32.xlu0 %v592, 64
    %v630 = vpop.permute.xlu0 %629
    %631 = vrot.lane.b32.xlu0 %v593, 64
    %v632 = vpop.permute.xlu0 %631
    %633 = vrot.lane.b32.xlu0 %v594, 64
    %v634 = vpop.permute.xlu0 %633
    %635 = vrot.lane.b32.xlu0 %v595, 64
    %v636 = vpop.permute.xlu0 %635
    %637 = vrot.lane.b32.xlu0 %v596, 64
    %v638 = vpop.permute.xlu0 %637
    %639 = vrot.lane.b32.xlu0 %v597, 64
    %v640 = vpop.permute.xlu0 %639
    %641 = vrot.lane.b32.xlu0 %v598, 64
    %v642 = vpop.permute.xlu0 %641
    %643 = vrot.lane.b32.xlu0 %v599, 64
    %v644 = vpop.permute.xlu0 %643
    %645 = vrot.lane.b32.xlu0 %v600, 64
    %v646 = vpop.permute.xlu0 %645
    %647 = vrot.lane.b32.xlu0 %v601, 64
    %v648 = vpop.permute.xlu0 %647
    %649 = vrot.lane.b32.xlu0 %v602, 64
    %v650 = vpop.permute.xlu0 %649
    %v667 = vsel %vm215, %v443, %v620
    %v668 = vsel %vm215, %v444, %v622
    %v669 = vsel %vm215, %v445, %v624
    %v670 = vsel %vm215, %v446, %v626
    %v671 = vsel %vm215, %v447, %v628
    %v672 = vsel %vm215, %v448, %v630
    %v673 = vsel %vm215, %v449, %v632
    %v674 = vsel %vm215, %v450, %v634
    %v675 = vsel %vm215, %v451, %v636
    %v676 = vsel %vm215, %v452, %v638
    %v677 = vsel %vm215, %v453, %v640
    %v678 = vsel %vm215, %v454, %v642
    %v679 = vsel %vm215, %v455, %v644
    %v680 = vsel %vm215, %v456, %v646
    %v681 = vsel %vm215, %v457, %v648
    %v682 = vsel %vm215, %v458, %v650
    %v683 = vlaneseq
    %v684 = vshrl.u32 %v683, 7
    %v685 = vadd.s32 %v684, 80
    %686 = vset.pattern.permute.xlu0 %v685
    %687 = vperm.xlu0 %686, %v323
    %v688 = vpop.permute.xlu0 %687
    %v689 = vlaneseq
    %v690 = vshrl.u32 %v689, 7
    %v691 = vadd.s32 %v690, 88
    %692 = vset.pattern.permute.xlu0 %v691
    %693 = vperm.xlu0 %692, %v323
    %v694 = vpop.permute.xlu0 %693
    %v695 = vlaneseq
    %v696 = vshrl.u32 %v695, 7
    %v697 = vadd.s32 %v696, 80
    %698 = vset.pattern.permute.xlu0 %v697
    %699 = vperm.xlu0 %698, %v336
    %v700 = vpop.permute.xlu0 %699
    %v701 = vlaneseq
    %v702 = vshrl.u32 %v701, 7
    %v703 = vadd.s32 %v702, 88
    %704 = vset.pattern.permute.xlu0 %v703
    %705 = vperm.xlu0 %704, %v336
    %v706 = vpop.permute.xlu0 %705
    %v707 = vlaneseq
    %v708 = vshrl.u32 %v707, 7
    %v709 = vadd.s32 %v708, 80
    %710 = vset.pattern.permute.xlu0 %v709
    %711 = vperm.xlu0 %710, %v349
    %v712 = vpop.permute.xlu0 %711
    %v713 = vlaneseq
    %v714 = vshrl.u32 %v713, 7
    %v715 = vadd.s32 %v714, 88
    %716 = vset.pattern.permute.xlu0 %v715
    %717 = vperm.xlu0 %716, %v349
    %v718 = vpop.permute.xlu0 %717
    %v719 = vlaneseq
    %v720 = vshrl.u32 %v719, 7
    %v721 = vadd.s32 %v720, 80
    %722 = vset.pattern.permute.xlu0 %v721
    %723 = vperm.xlu0 %722, %v362
    %v724 = vpop.permute.xlu0 %723
    %v725 = vlaneseq
    %v726 = vshrl.u32 %v725, 7
    %v727 = vadd.s32 %v726, 88
    %728 = vset.pattern.permute.xlu0 %v727
    %729 = vperm.xlu0 %728, %v362
    %v730 = vpop.permute.xlu0 %729
    %v731 = vlaneseq
    %v732 = vshrl.u32 %v731, 7
    %v733 = vadd.s32 %v732, 80
    %734 = vset.pattern.permute.xlu0 %v733
    %735 = vperm.xlu0 %734, %v375
    %v736 = vpop.permute.xlu0 %735
    %v737 = vlaneseq
    %v738 = vshrl.u32 %v737, 7
    %v739 = vadd.s32 %v738, 88
    %740 = vset.pattern.permute.xlu0 %v739
    %741 = vperm.xlu0 %740, %v375
    %v742 = vpop.permute.xlu0 %741
    %v743 = vlaneseq
    %v744 = vshrl.u32 %v743, 7
    %v745 = vadd.s32 %v744, 80
    %746 = vset.pattern.permute.xlu0 %v745
    %747 = vperm.xlu0 %746, %v388
    %v748 = vpop.permute.xlu0 %747
    %v749 = vlaneseq
    %v750 = vshrl.u32 %v749, 7
    %v751 = vadd.s32 %v750, 88
    %752 = vset.pattern.permute.xlu0 %v751
    %753 = vperm.xlu0 %752, %v388
    %v754 = vpop.permute.xlu0 %753
    %v755 = vlaneseq
    %v756 = vshrl.u32 %v755, 7
    %v757 = vadd.s32 %v756, 80
    %758 = vset.pattern.permute.xlu0 %v757
    %759 = vperm.xlu0 %758, %v401
    %v760 = vpop.permute.xlu0 %759
    %v761 = vlaneseq
    %v762 = vshrl.u32 %v761, 7
    %v763 = vadd.s32 %v762, 88
    %764 = vset.pattern.permute.xlu0 %v763
    %765 = vperm.xlu0 %764, %v401
    %v766 = vpop.permute.xlu0 %765
    %v767 = vlaneseq
    %v768 = vshrl.u32 %v767, 7
    %v769 = vadd.s32 %v768, 80
    %770 = vset.pattern.permute.xlu0 %v769
    %771 = vperm.xlu0 %770, %v414
    %v772 = vpop.permute.xlu0 %771
    %v773 = vlaneseq
    %v774 = vshrl.u32 %v773, 7
    %v775 = vadd.s32 %v774, 88
    %776 = vset.pattern.permute.xlu0 %v775
    %777 = vperm.xlu0 %776, %v414
    %v778 = vpop.permute.xlu0 %777
    %v779 = vlaneseq
    %v780 = vshrl.u32 %v779, 7
    %v781 = vadd.s32 %v780, 80
    %782 = vset.pattern.permute.xlu0 %v781
    %783 = vperm.xlu0 %782, %v467
    %v784 = vpop.permute.xlu0 %783
    %v785 = vlaneseq
    %v786 = vshrl.u32 %v785, 7
    %v787 = vadd.s32 %v786, 88
    %788 = vset.pattern.permute.xlu0 %v787
    %789 = vperm.xlu0 %788, %v467
    %v790 = vpop.permute.xlu0 %789
    %v791 = vlaneseq
    %v792 = vshrl.u32 %v791, 7
    %v793 = vadd.s32 %v792, 80
    %794 = vset.pattern.permute.xlu0 %v793
    %795 = vperm.xlu0 %794, %v480
    %v796 = vpop.permute.xlu0 %795
    %v797 = vlaneseq
    %v798 = vshrl.u32 %v797, 7
    %v799 = vadd.s32 %v798, 88
    %800 = vset.pattern.permute.xlu0 %v799
    %801 = vperm.xlu0 %800, %v480
    %v802 = vpop.permute.xlu0 %801
    %v803 = vlaneseq
    %v804 = vshrl.u32 %v803, 7
    %v805 = vadd.s32 %v804, 80
    %806 = vset.pattern.permute.xlu0 %v805
    %807 = vperm.xlu0 %806, %v493
    %v808 = vpop.permute.xlu0 %807
    %v809 = vlaneseq
    %v810 = vshrl.u32 %v809, 7
    %v811 = vadd.s32 %v810, 88
    %812 = vset.pattern.permute.xlu0 %v811
    %813 = vperm.xlu0 %812, %v493
    %v814 = vpop.permute.xlu0 %813
    %v815 = vlaneseq
    %v816 = vshrl.u32 %v815, 7
    %v817 = vadd.s32 %v816, 80
    %818 = vset.pattern.permute.xlu0 %v817
    %819 = vperm.xlu0 %818, %v506
    %v820 = vpop.permute.xlu0 %819
    %v821 = vlaneseq
    %v822 = vshrl.u32 %v821, 7
    %v823 = vadd.s32 %v822, 88
    %824 = vset.pattern.permute.xlu0 %v823
    %825 = vperm.xlu0 %824, %v506
    %v826 = vpop.permute.xlu0 %825
    %v827 = vlaneseq
    %v828 = vshrl.u32 %v827, 7
    %v829 = vadd.s32 %v828, 80
    %830 = vset.pattern.permute.xlu0 %v829
    %831 = vperm.xlu0 %830, %v519
    %v832 = vpop.permute.xlu0 %831
    %v833 = vlaneseq
    %v834 = vshrl.u32 %v833, 7
    %v835 = vadd.s32 %v834, 88
    %836 = vset.pattern.permute.xlu0 %v835
    %837 = vperm.xlu0 %836, %v519
    %v838 = vpop.permute.xlu0 %837
    %v839 = vlaneseq
    %v840 = vshrl.u32 %v839, 7
    %v841 = vadd.s32 %v840, 80
    %842 = vset.pattern.permute.xlu0 %v841
    %843 = vperm.xlu0 %842, %v532
    %v844 = vpop.permute.xlu0 %843
    %v845 = vlaneseq
    %v846 = vshrl.u32 %v845, 7
    %v847 = vadd.s32 %v846, 88
    %848 = vset.pattern.permute.xlu0 %v847
    %849 = vperm.xlu0 %848, %v532
    %v850 = vpop.permute.xlu0 %849
    %v851 = vlaneseq
    %v852 = vshrl.u32 %v851, 7
    %v853 = vadd.s32 %v852, 80
    %854 = vset.pattern.permute.xlu0 %v853
    %855 = vperm.xlu0 %854, %v545
    %v856 = vpop.permute.xlu0 %855
    %v857 = vlaneseq
    %v858 = vshrl.u32 %v857, 7
    %v859 = vadd.s32 %v858, 88
    %860 = vset.pattern.permute.xlu0 %v859
    %861 = vperm.xlu0 %860, %v545
    %v862 = vpop.permute.xlu0 %861
    %v863 = vlaneseq
    %v864 = vshrl.u32 %v863, 7
    %v865 = vadd.s32 %v864, 80
    %866 = vset.pattern.permute.xlu0 %v865
    %867 = vperm.xlu0 %866, %v558
    %v868 = vpop.permute.xlu0 %867
    %v869 = vlaneseq
    %v870 = vshrl.u32 %v869, 7
    %v871 = vadd.s32 %v870, 88
    %872 = vset.pattern.permute.xlu0 %v871
    %873 = vperm.xlu0 %872, %v558
    %v874 = vpop.permute.xlu0 %873
    %v875 = vsel %vm215, %v688, %v784
    %v876 = vsel %vm215, %v694, %v790
    %v877 = vsel %vm215, %v700, %v796
    %v878 = vsel %vm215, %v706, %v802
    %v879 = vsel %vm215, %v712, %v808
    %v880 = vsel %vm215, %v718, %v814
    %v881 = vsel %vm215, %v724, %v820
    %v882 = vsel %vm215, %v730, %v826
    %v883 = vsel %vm215, %v736, %v832
    %v884 = vsel %vm215, %v742, %v838
    %v885 = vsel %vm215, %v748, %v844
    %v886 = vsel %vm215, %v754, %v850
    %v887 = vsel %vm215, %v760, %v856
    %v888 = vsel %vm215, %v766, %v862
    %v889 = vsel %vm215, %v772, %v868
    %v890 = vsel %vm215, %v778, %v874
    %v891 = vmul.f32 %v667, %v875
    %v892 = vmul.f32 %v668, %v876
    %v893 = vadd.f32 %v891, %v892
    %v894 = vrot.slane %v893, 4
    %v895 = vadd.f32 %v893, %v894
    %v896 = vrot.slane %v895, 2
    %v897 = vadd.f32 %v895, %v896
    %v898 = vrot.slane %v897, 1
    %v899 = vadd.f32 %v897, %v898
    %v900 = vperm.slane %v288, 1
    %v901 = vmul.f32 %v900, %v308
    %v902 = vmul.f32 %v900, %v309
    %v903 = vmul.f32 %v901, 1.442695
    %v904 = vpow.pop %v903
    %v905 = vmul.f32 %v902, 1.442695
    %v906 = vpow.pop %v905
    %v907 = vmul.f32 %v904, %v667
    %v908 = vmul.f32 %v906, %v668
    %v909 = vadd.f32 %v907, %v669
    %v910 = vadd.f32 %v908, %v670
    %v911 = vmul.f32 %v909, %v877
    %v912 = vmul.f32 %v910, %v878
    %v913 = vadd.f32 %v911, %v912
    %v914 = vrot.slane %v913, 4
    %v915 = vadd.f32 %v913, %v914
    %v916 = vrot.slane %v915, 2
    %v917 = vadd.f32 %v915, %v916
    %v918 = vrot.slane %v917, 1
    %v919 = vadd.f32 %v917, %v918
    %v920 = vperm.slane %v288, 2
    %v921 = vmul.f32 %v920, %v308
    %v922 = vmul.f32 %v920, %v309
    %v923 = vmul.f32 %v921, 1.442695
    %v924 = vpow.pop %v923
    %v925 = vmul.f32 %v922, 1.442695
    %v926 = vpow.pop %v925
    %v927 = vmul.f32 %v924, %v909
    %v928 = vmul.f32 %v926, %v910
    %v929 = vadd.f32 %v927, %v671
    %v930 = vadd.f32 %v928, %v672
    %v931 = vmul.f32 %v929, %v879
    %v932 = vmul.f32 %v930, %v880
    %v933 = vadd.f32 %v931, %v932
    %v934 = vrot.slane %v933, 4
    %v935 = vadd.f32 %v933, %v934
    %v936 = vrot.slane %v935, 2
    %v937 = vadd.f32 %v935, %v936
    %v938 = vrot.slane %v937, 1
    %v939 = vadd.f32 %v937, %v938
    %v940 = vperm.slane %v288, 3
    %v941 = vmul.f32 %v940, %v308
    %v942 = vmul.f32 %v940, %v309
    %v943 = vmul.f32 %v941, 1.442695
    %v944 = vpow.pop %v943
    %v945 = vmul.f32 %v942, 1.442695
    %v946 = vpow.pop %v945
    %v947 = vmul.f32 %v944, %v929
    %v948 = vmul.f32 %v946, %v930
    %v949 = vadd.f32 %v947, %v673
    %v950 = vadd.f32 %v948, %v674
    %v951 = vmul.f32 %v949, %v881
    %v952 = vmul.f32 %v950, %v882
    %v953 = vadd.f32 %v951, %v952
    %v954 = vrot.slane %v953, 4
    %v955 = vadd.f32 %v953, %v954
    %v956 = vrot.slane %v955, 2
    %v957 = vadd.f32 %v955, %v956
    %v958 = vrot.slane %v957, 1
    %v959 = vadd.f32 %v957, %v958
    %v960 = vperm.slane %v288, 4
    %v961 = vmul.f32 %v960, %v308
    %v962 = vmul.f32 %v960, %v309
    %v963 = vmul.f32 %v961, 1.442695
    %v964 = vpow.pop %v963
    %v965 = vmul.f32 %v962, 1.442695
    %v966 = vpow.pop %v965
    %v967 = vmul.f32 %v964, %v949
    %v968 = vmul.f32 %v966, %v950
    %v969 = vadd.f32 %v967, %v675
    %v970 = vadd.f32 %v968, %v676
    %v971 = vmul.f32 %v969, %v883
    %v972 = vmul.f32 %v970, %v884
    %v973 = vadd.f32 %v971, %v972
    %v974 = vrot.slane %v973, 4
    %v975 = vadd.f32 %v973, %v974
    %v976 = vrot.slane %v975, 2
    %v977 = vadd.f32 %v975, %v976
    %v978 = vrot.slane %v977, 1
    %v979 = vadd.f32 %v977, %v978
    %v980 = vperm.slane %v288, 5
    %v981 = vmul.f32 %v980, %v308
    %v982 = vmul.f32 %v980, %v309
    %v983 = vmul.f32 %v981, 1.442695
    %v984 = vpow.pop %v983
    %v985 = vmul.f32 %v982, 1.442695
    %v986 = vpow.pop %v985
    %v987 = vmul.f32 %v984, %v969
    %v988 = vmul.f32 %v986, %v970
    %v989 = vadd.f32 %v987, %v677
    %v990 = vadd.f32 %v988, %v678
    %v991 = vmul.f32 %v989, %v885
    %v992 = vmul.f32 %v990, %v886
    %v993 = vadd.f32 %v991, %v992
    %v994 = vrot.slane %v993, 4
    %v995 = vadd.f32 %v993, %v994
    %v996 = vrot.slane %v995, 2
    %v997 = vadd.f32 %v995, %v996
    %v998 = vrot.slane %v997, 1
    %v999 = vadd.f32 %v997, %v998
    %v1000 = vperm.slane %v288, 6
    %v1001 = vmul.f32 %v1000, %v308
    %v1002 = vmul.f32 %v1000, %v309
    %v1003 = vmul.f32 %v1001, 1.442695
    %v1004 = vpow.pop %v1003
    %v1005 = vmul.f32 %v1002, 1.442695
    %v1006 = vpow.pop %v1005
    %v1007 = vmul.f32 %v1004, %v989
    %v1008 = vmul.f32 %v1006, %v990
    %v1009 = vadd.f32 %v1007, %v679
    %v1010 = vadd.f32 %v1008, %v680
    %v1011 = vmul.f32 %v1009, %v887
    %v1012 = vmul.f32 %v1010, %v888
    %v1013 = vadd.f32 %v1011, %v1012
    %v1014 = vrot.slane %v1013, 4
    %v1015 = vadd.f32 %v1013, %v1014
    %v1016 = vrot.slane %v1015, 2
    %v1017 = vadd.f32 %v1015, %v1016
    %v1018 = vrot.slane %v1017, 1
    %v1019 = vadd.f32 %v1017, %v1018
    %v1020 = vperm.slane %v288, 7
    %v1021 = vmul.f32 %v1020, %v308
    %v1022 = vmul.f32 %v1020, %v309
    %v1023 = vmul.f32 %v1021, 1.442695
    %v1024 = vpow.pop %v1023
    %v1025 = vmul.f32 %v1022, 1.442695
    %v1026 = vpow.pop %v1025
    %v1027 = vmul.f32 %v1024, %v1009
    %v1028 = vmul.f32 %v1026, %v1010
    %v1029 = vadd.f32 %v1027, %v681
    %v1030 = vadd.f32 %v1028, %v682
    %v1031 = vmul.f32 %v1029, %v889
    %v1032 = vmul.f32 %v1030, %v890
    %v1033 = vadd.f32 %v1031, %v1032
    %v1034 = vrot.slane %v1033, 4
    %v1035 = vadd.f32 %v1033, %v1034
    %v1036 = vrot.slane %v1035, 2
    %v1037 = vadd.f32 %v1035, %v1036
    %v1038 = vrot.slane %v1037, 1
    %v1039 = vadd.f32 %v1037, %v1038
    %vm1040 = vcmask 1040384
    %v1041 = vsel %vm1040, %v899, %v919
    %vm1042 = vcmask 1041408
    %v1043 = vsel %vm1042, %v1041, %v939
    %vm1044 = vcmask 1042432
    %v1045 = vsel %vm1044, %v1043, %v959
    %vm1046 = vcmask 1043456
    %v1047 = vsel %vm1046, %v1045, %v979
    %vm1048 = vcmask 1044480
    %v1049 = vsel %vm1048, %v1047, %v999
    %vm1050 = vcmask 1045504
    %v1051 = vsel %vm1050, %v1049, %v1019
    %vm1052 = vcmask 1046528
    %v1053 = vsel %vm1052, %v1051, %v1039
    %v1054 = vperm.slane %v314, 6
    %v1055 = vmul.f32 %v292, %v1054
    %v1056 = vadd.f32 %v1053, %v1055
    %v1057 = vxor.u32 %v297, 2147483648
    %v1058 = vmul.f32 %v1057, 1.442695
    %v1059 = vpow.pop %v1058
    %v1060 = vadd.f32 %v1059, 1.0
    %v1061 = vrcp.pop %v1060
    %v1062 = vmul.f32 %v1060, %v1061
    %v1063 = vsub.f32 1.0, %v1062
    %v1064 = vmul.f32 %v1061, %v1063
    %v1065 = vadd.f32 %v1061, %v1064
    %vm1066 = vweird.f32 %v1060
    %vm1067 = vweird.f32 %v1061
    %vm1068 = vmor %vm1066, %vm1067
    %v1069 = vsel %vm1068, %v1061, %v1065
    %v1070 = vand.u32 2147483647, %v1060
    %vm1071 = vcmp.eq.f32.partialorder %v1070, 8.507059e+37
    %v1072 = vand.u32 %v1060, 2147483648
    %v1073 = vor.u32 1.1754944e-38, %v1072
    %v1074 = vsel %vm1071, %v1073, %v1069
    %v1075 = vmul.f32 1.0, %v1074
    %v1076 = vmul.f32 %v297, %v1075
    %v1077 = vmul.f32 %v1056, %v1076
    %1079 = vrot.lane.b32.xlu0 %v1077, 64
    %v1080 = vpop.permute.xlu0 %1079
    %v1081 = vld [vmem:[%s4] sm:$0xff]
    %v1082 = vld [vmem:[%s4 + $0x8] sm:$0xff]
    %v1083 = vld [vmem:[%s4 + $0x10] sm:$0xff]
    %v1084 = vld [vmem:[%s4 + $0x18] sm:$0xff]
    %v1085 = vld [vmem:[%s4 + $0x20] sm:$0xff]
    %v1086 = vld [vmem:[%s4 + $0x28] sm:$0xff]
    %v1087 = vld [vmem:[%s4 + $0x30] sm:$0xff]
    %v1088 = vld [vmem:[%s4 + $0x38] sm:$0xff]
    %v1089 = vsel %vm215, %v1077, 0
    %v1091 = vsel %vm215, %v1080, 0
    %1093 = vmatpush.msra.mxu0 0.0
    %1094 = vmatpush.msra.mxu0 0.0
    %1095 = vmatpush.msra.mxu0 0.0
    %1096 = vmatpush.msra.mxu0 0.0
    %1097 = vmatpush.msra.mxu0 0.0
    %1098 = vmatpush.msra.mxu0 0.0
    %1099 = vmatpush.msra.mxu0 0.0
    %1100 = vmatpush.msra.mxu0 0.0
    %1101 = vmatpush.msra.mxu0 %v1088
    %1102 = vmatpush.msra.mxu0 %v1087
    %1103 = vmatpush.msra.mxu0 %v1086
    %1104 = vmatpush.msra.mxu0 %v1085
    %1105 = vmatpush.msra.mxu0 %v1084
    %1106 = vmatpush.msra.mxu0 %v1083
    %1107 = vmatpush.msra.mxu0 %v1082
    %1108 = vmatpush.msra.mxu0 %v1081
    %1109 = vmatmul.f32.gmra.mxu0 %v1089
    %v1110 = vpop.f32.mrf.mxu0
    %v1111 = vadd.f32 0.0, %v1110
    %1112 = vmatmul.f32.gmra.mxu0 %v1091
    %v1113 = vpop.f32.mrf.mxu0
    %v1114 = vadd.f32 0.0, %v1113
    %1115 = vdwg.mxu0
    %1116 = vst.msk [vmem:[#allocation7] sm:$0xff] %vm62, %v1111
    %1117 = vst.msk [vmem:[#allocation7 + $0x8] sm:$0xff] %vm62, %v1114
    // Predicated region
    $region30: #{tpu_custom_call.1} parent=1 // pred_check
      _
    $region31: #{tpu_custom_call.1} parent=1 // pred_check_branch
      %1119 = sbr.rel (0) target = $region33
    $region32: #{tpu_custom_call.1} parent=1 // pred_region
      %1121 = vsyncadd [#allocation4], 0
      %s1122 = sshll.u32 [#allocation7], 4
      %s1123 = int_to_ptr.vmem [resolvable:$true] %s1122
      %s1124 = sshll.u32 %s5, 4
      %s1125 = int_to_ptr.hbm [resolvable:$true] %s1124
      %1130 = dma.vmem_to_hbm [thread:$0]  %s1123, 256, %s1125, [#allocation4], 128, 128, 8
    $region33: #{tpu_custom_call.1} parent=1 // pred_fallthru
      _
    // Predicated region
    $region34: #{tpu_custom_call.1} parent=1 // pred_check
      _
    $region35: #{tpu_custom_call.1} parent=1 // pred_check_branch
      %1132 = sbr.rel (0) target = $region37
    $region36: #{tpu_custom_call.1} parent=1 // pred_region
      %1134 = dma.done [#allocation4], 256
    $region37: #{tpu_custom_call.1} parent=1 // pred_fallthru
      _
    %1135 = vsyncpa [#allocation3], 1
    %1136 = vsyncpa [#allocation6], 1
    %1137 = vsyncpa [#allocation4], 1

</llo_original>
